<compile_context>
chip_gen: v5e
topology: v5e:2x2
jax: 0.10.0
libtpu: 0.0.40
codegen_flags: <defaults>
</compile_context>

<pallas_src>
import jax
import jax.numpy as jnp
from jax import lax
from jax.experimental import pallas as pl
from jax.experimental.pallas import tpu as pltpu


def _round_up(x, m):
    return (x + m - 1) // m * m


def _vmem_limit(nbytes):
    # Explicit scoped-VMEM budget: 2x estimated need + margin, capped well under
    # v7x's 64 MiB physical VMEM.
    return int(min(max(2 * nbytes + (4 << 20), 8 << 20), 48 << 20))


# ----------------------------------------------------------------------------
# Kernel A: sequential LSTM recurrence (h @ W_hh only; x-projection precomputed)
# ----------------------------------------------------------------------------
def _lstm_recurrent_kernel(xg_ref, whh_ref, out_ref, h_sc, c_sc):
    """One grid step == one chunk of t_chunk timesteps.

    xg_ref : (Tc, B, 4H)  f32   precomputed x @ W_ih + (b_ih + b_hh)
    whh_ref: (H, 4H)      bf16  hidden->gates weights (pre-transposed)
    out_ref: (Tc, B, H)   bf16  hidden states for this chunk
    h_sc, c_sc : (B, H)   f32   recurrent state, persists across grid steps
    """
    c = pl.program_id(0)

    @pl.when(c == 0)
    def _():
        h_sc[...] = jnp.zeros_like(h_sc)
        c_sc[...] = jnp.zeros_like(c_sc)

    H = h_sc.shape[-1]
    Tc = xg_ref.shape[0]
    whh = whh_ref[...]                                     # hoisted load (bf16)

    def step(i, carry):
        h_prev = h_sc[...]                                 # (B, H) f32
        c_prev = c_sc[...]                                 # (B, H) f32
        gates = xg_ref[i] + jnp.dot(
            h_prev.astype(jnp.bfloat16), whh,
            preferred_element_type=jnp.float32)            # (B, 4H) f32

        # PyTorch LSTM gate order: i, f, g, o  (H is a 128-multiple -> tile-aligned)
        i_g = jax.nn.sigmoid(gates[:, 0 * H:1 * H])
        f_g = jax.nn.sigmoid(gates[:, 1 * H:2 * H])
        g_g = jnp.tanh(gates[:, 2 * H:3 * H])
        o_g = jax.nn.sigmoid(gates[:, 3 * H:4 * H])

        c_new = f_g * c_prev + i_g * g_g
        h_new = o_g * jnp.tanh(c_new)

        c_sc[...] = c_new
        h_sc[...] = h_new
        out_ref[i] = h_new.astype(out_ref.dtype)
        return carry

    lax.fori_loop(0, Tc, step, 0, unroll=True)


# ----------------------------------------------------------------------------
# Kernel B: parallel output projection  logits = h @ W_lin + b_lin
# ----------------------------------------------------------------------------
def _projection_kernel(h_ref, w_ref, b_ref, out_ref):
    """h_ref: (Rt, H) bf16, w_ref: (H, Vt) bf16, b_ref: (1, Vt) f32, out: (Rt, Vt) f32."""
    out_ref[...] = (jnp.dot(h_ref[...], w_ref[...],
                            preferred_element_type=jnp.float32)
                    + b_ref[...]).astype(out_ref.dtype)


# ----------------------------------------------------------------------------
# Wrapper
# ----------------------------------------------------------------------------
def decoder_rnn_forward(features, captions, params, *, t_chunk=16):
    """Pallas implementation of DecoderRNN.forward.

    features : (B, E) float32
    captions : (B, L) int32
    returns  : (B, L, V) float32
    """
    embed_tbl = params["embed"]      # (V, E)
    w_ih = params["w_ih"]            # (E, 4H)
    w_hh = params["w_hh"]            # (H, 4H)
    b_g = params["b_gates"]          # (1, 4H)
    w_lin = params["w_lin"]          # (H, V)
    b_lin = params["b_lin"]          # (1, V)

    B, E = features.shape
    H = w_hh.shape[0]
    V = w_lin.shape[1]

    # ---- XLA glue: embedding gather + concat image feature as timestep 0 ----
    emb = jnp.take(embed_tbl, captions[:, :-1], axis=0)            # (B, L-1, E)
    inputs_bte = jnp.concatenate([features[:, None, :], emb], 1)   # (B, T, E)
    T = inputs_bte.shape[1]

    # ---- Hoisted input projection (one big parallel matmul, bf16 -> f32) ----
    xg_bt = (jnp.einsum('bte,eg->btg',
                        inputs_bte.astype(jnp.bfloat16),
                        w_ih.astype(jnp.bfloat16),
                        preferred_element_type=jnp.float32)
             + b_g[0].astype(jnp.float32))                         # (B, T, 4H)

    # ---- Padding to TPU-friendly shapes --------------------------------------
    t_chunk = min(t_chunk, _round_up(T, 8))
    t_chunk = _round_up(t_chunk, 8)
    B_pad = _round_up(max(B, 8), 8)        # sublane multiple -> unmasked stores
    T_pad = _round_up(T, t_chunk)
    H_pad = _round_up(H, 128)              # lane multiple -> tile-aligned gate slices
    V_pad = _round_up(V, 128)
    v_tile = min(V_pad, 512)
    V_pad = _round_up(V_pad, v_tile)

    # Gate-block-aware zero padding (padded hidden units stay exactly zero).
    xg4 = xg_bt.reshape(B, T, 4, H)
    xg4 = jnp.pad(xg4, ((0, B_pad - B), (0, T_pad - T), (0, 0), (0, H_pad - H)))
    xg_tbg = jnp.transpose(xg4.reshape(B_pad, T_pad, 4 * H_pad),
                           (1, 0, 2))                              # (T_pad, B_pad, 4H_pad)

    whh4 = jnp.pad(w_hh.reshape(H, 4, H),
                   ((0, H_pad - H), (0, 0), (0, H_pad - H)))
    w_hh_p = whh4.reshape(H_pad, 4 * H_pad).astype(jnp.bfloat16)

    w_lin_p = jnp.pad(w_lin, ((0, H_pad - H), (0, V_pad - V))).astype(jnp.bfloat16)
    b_lin_p = jnp.pad(b_lin, ((0, 0), (0, V_pad - V))).astype(jnp.float32)

    # ---- Kernel A: sequential recurrence over T chunks -----------------------
    n_chunks = T_pad // t_chunk
    rec_bytes = (2 * t_chunk * B_pad * 4 * H_pad * 4      # xg blocks (f32, dbl-buf)
                 + 2 * H_pad * 4 * H_pad * 2              # W_hh (bf16, dbl-buf)
                 + 2 * t_chunk * B_pad * H_pad * 2        # out blocks (bf16, dbl-buf)
                 + 2 * B_pad * H_pad * 4)                 # h, c scratch (f32)

    h_tbh = pl.pallas_call(
        _lstm_recurrent_kernel,
        out_shape=jax.ShapeDtypeStruct((T_pad, B_pad, H_pad), jnp.bfloat16),
        grid_spec=pltpu.PrefetchScalarGridSpec(
            num_scalar_prefetch=0,
            grid=(n_chunks,),
            in_specs=[
                pl.BlockSpec((t_chunk, B_pad, 4 * H_pad), lambda c: (c, 0, 0)),
                pl.BlockSpec((H_pad, 4 * H_pad), lambda c: (0, 0)),
            ],
            out_specs=pl.BlockSpec((t_chunk, B_pad, H_pad), lambda c: (c, 0, 0)),
            scratch_shapes=[
                pltpu.VMEM((B_pad, H_pad), jnp.float32),   # h state
                pltpu.VMEM((B_pad, H_pad), jnp.float32),   # c state
            ],
        ),
        compiler_params=pltpu.CompilerParams(
            dimension_semantics=("arbitrary",),            # time loop is sequential
            vmem_limit_bytes=_vmem_limit(rec_bytes)),
    )(xg_tbg, w_hh_p)

    # ---- Kernel B: parallel output projection ---------------------------------
    # Transpose only the (T, B, H) hidden states (V/H x cheaper than transposing
    # logits); projection then writes batch-first rows directly.
    h_rows = jnp.transpose(h_tbh, (1, 0, 2)).reshape(B_pad * T_pad, H_pad)
    R = B_pad * T_pad
    r_tile = 128 if R % 128 == 0 else 64

    proj_bytes = (2 * r_tile * H_pad * 2
                  + 2 * H_pad * v_tile * 2
                  + 2 * v_tile * 4
                  + 2 * r_tile * v_tile * 4)

    logits = pl.pallas_call(
        _projection_kernel,
        out_shape=jax.ShapeDtypeStruct((R, V_pad), jnp.float32),
        grid_spec=pltpu.PrefetchScalarGridSpec(
            num_scalar_prefetch=0,
            grid=(R // r_tile, V_pad // v_tile),
            in_specs=[
                pl.BlockSpec((r_tile, H_pad), lambda r, v: (r, 0)),
                pl.BlockSpec((H_pad, v_tile), lambda r, v: (0, v)),
                pl.BlockSpec((1, v_tile), lambda r, v: (0, v)),
            ],
            out_specs=pl.BlockSpec((r_tile, v_tile), lambda r, v: (r, v)),
        ),
        compiler_params=pltpu.CompilerParams(
            dimension_semantics=("parallel", "parallel"),   # megacore-shardable (v7x)
            vmem_limit_bytes=_vmem_limit(proj_bytes)),
    )(h_rows, w_lin_p, b_lin_p)

    out = logits.reshape(B_pad, T_pad, V_pad)[:B, :T, :V]
    return out                                              # (B, T, V), batch_first


# ----------------------------------------------------------------------------
# Pure-JAX reference (torch nn.LSTM + nn.Linear semantics, same precision plan)
# ----------------------------------------------------------------------------
def _reference_forward(features, captions, params):
    embed_tbl = params["embed"]
    w_ih, w_hh = params["w_ih"], params["w_hh"]
    b_g, w_lin, b_lin = params["b_gates"], params["w_lin"], params["b_lin"]
    H = w_hh.shape[0]
    V = w_lin.shape[1]

    emb = jnp.take(embed_tbl, captions[:, :-1], axis=0)
    x = jnp.concatenate([features[:, None, :], emb], 1)     # (B, T, E)
    B, T, _ = x.shape

    xg = (jnp.einsum('bte,eg->btg', x.astype(jnp.bfloat16),
                     w_ih.astype(jnp.bfloat16),
                     preferred_element_type=jnp.float32)
          + b_g[0].astype(jnp.float32))                     # (B, T, 4H)
    w_hh_b = w_hh.astype(jnp.bfloat16)

    def step(carry, g_x):
        h, c = carry
        g = g_x + jnp.dot(h.astype(jnp.bfloat16), w_hh_b,
                          preferred_element_type=jnp.float32)
        i = jax.nn.sigmoid(g[:, 0 * H:1 * H])
        f = jax.nn.sigmoid(g[:, 1 * H:2 * H])
        gg = jnp.tanh(g[:, 2 * H:3 * H])
        o = jax.nn.sigmoid(g[:, 3 * H:4 * H])
        c = f * c + i * gg
        h = o * jnp.tanh(c)
        return (h, c), h

    h0 = jnp.zeros((B, H), jnp.float32)
    (_, _), hs = lax.scan(step, (h0, h0), jnp.transpose(xg, (1, 0, 2)))
    hidden = jnp.transpose(hs, (1, 0, 2))                   # (B, T, H)

    logits = (jnp.dot(hidden.astype(jnp.bfloat16).reshape(B * T, H),
                      w_lin.astype(jnp.bfloat16),
                      preferred_element_type=jnp.float32).reshape(B, T, V)
              + b_lin[0])
    return logits


def init_params(key, embed_size, hidden_size, vocab_size):
    ks = jax.random.split(key, 7)
    s = 1.0 / jnp.sqrt(hidden_size)
    return {
        "embed": jax.random.normal(ks[0], (vocab_size, embed_size), jnp.float32),
        # stored pre-transposed: x @ W_ih, h @ W_hh
        "w_ih": jax.random.uniform(ks[1], (embed_size, 4 * hidden_size),
                                   jnp.float32, -s, s),
        "w_hh": jax.random.uniform(ks[2], (hidden_size, 4 * hidden_size),
                                   jnp.float32, -s, s),
        "b_gates": (jax.random.uniform(ks[3], (1, 4 * hidden_size),
                                       jnp.float32, -s, s)
                    + jax.random.uniform(ks[4], (1, 4 * hidden_size),
                                         jnp.float32, -s, s)),
        "w_lin": jax.random.uniform(ks[5], (hidden_size, vocab_size),
                                    jnp.float32, -s, s),
        "b_lin": jax.random.uniform(ks[6], (1, vocab_size),
                                    jnp.float32, -s, s),
    }


if __name__ == "__main__":
    # Small, lane/sublane-friendly shapes consistent with the module's forward.
    B, L = 2, 8             # batch, caption length  (T = L after drop-last + feature)
    E, H, V = 128, 128, 256  # embed_size, hidden_size, vocab_size

    key = jax.random.PRNGKey(0)
    k_p, k_f, k_c = jax.random.split(key, 3)
    params = init_params(k_p, E, H, V)
    features = jax.random.normal(k_f, (B, E), jnp.float32)
    captions = jax.random.randint(k_c, (B, L), 0, V, jnp.int32)

    out = decoder_rnn_forward(features, captions, params)
    out = jax.block_until_ready(out)

    ref = _reference_forward(features, captions, params)
    assert out.shape == (B, L, V)
    max_err = float(jnp.max(jnp.abs(out - ref)))
    assert jnp.allclose(out, ref, atol=2e-2, rtol=2e-2), \
        f"mismatch vs reference (max abs err {max_err})"

    print("KERNEL_OK")
</pallas_src>

<mosaic_0001>
module attributes {stable_mosaic.version = 11 : i64} {
  func.func @_lstm_recurrent_kernel(%arg0: i32, %arg1: memref<8x8x512xf32, #tpu.memory_space<vmem>>, %arg2: memref<128x512xbf16, #tpu.memory_space<vmem>>, %arg3: memref<8x8x128xbf16, #tpu.memory_space<vmem>>, %arg4: memref<8x128xf32, #tpu.memory_space<vmem>>, %arg5: memref<8x128xf32, #tpu.memory_space<vmem>>) attributes {dimension_semantics = [#tpu.dimension_semantics<arbitrary>], iteration_bounds = array<i64: 1>, scalar_prefetch = 0 : i64, scratch_operands = 2 : i64, tpu.core_type = #tpu.core_type<tc>, window_params = [{transform_indices = @transform_0, window_bounds = array<i64: 8, 8, 512>}, {pipeline_mode = #tpu.pipeline_mode<synchronous>, transform_indices = @transform_1, window_bounds = array<i64: 128, 512>}, {transform_indices = @transform_2, window_bounds = array<i64: 8, 8, 128>}]} {
    %c0_i32 = arith.constant 0 : i32
    %0 = arith.cmpi eq, %arg0, %c0_i32 : i32
    %1 = arith.extui %0 : i1 to i32
    %c0_i32_0 = arith.constant 0 : i32
    %2 = arith.cmpi ne, %1, %c0_i32_0 : i32
    scf.if %2 {
      %cst_130 = arith.constant 0.000000e+00 : f32
      %324 = vector.broadcast %cst_130 : f32 to vector<8x128xf32>
      %c0_131 = arith.constant 0 : index
      %c0_132 = arith.constant 0 : index
      %325 = vector.load %arg4[%c0_131, %c0_132] : memref<8x128xf32, #tpu.memory_space<vmem>>, vector<8x128xf32>
      tpu.vector_store %arg4[%c0_131, %c0_132], %324 {strides = array<i32>} : memref<8x128xf32, #tpu.memory_space<vmem>>, vector<8x128xf32>,
      %cst_133 = arith.constant 0.000000e+00 : f32
      %326 = vector.broadcast %cst_133 : f32 to vector<8x128xf32>
      %c0_134 = arith.constant 0 : index
      %c0_135 = arith.constant 0 : index
      %327 = vector.load %arg5[%c0_134, %c0_135] : memref<8x128xf32, #tpu.memory_space<vmem>>, vector<8x128xf32>
      tpu.vector_store %arg5[%c0_134, %c0_135], %326 {strides = array<i32>} : memref<8x128xf32, #tpu.memory_space<vmem>>, vector<8x128xf32>,
    } else {
    }
    %c0 = arith.constant 0 : index
    %c0_1 = arith.constant 0 : index
    %3 = vector.load %arg2[%c0, %c0_1] : memref<128x512xbf16, #tpu.memory_space<vmem>>, vector<128x512xbf16>
    %c0_i32_2 = arith.constant 0 : i32
    %c0_3 = arith.constant 0 : index
    %c0_4 = arith.constant 0 : index
    %4 = vector.load %arg4[%c0_3, %c0_4] : memref<8x128xf32, #tpu.memory_space<vmem>>, vector<8x128xf32>
    %c0_5 = arith.constant 0 : index
    %c0_6 = arith.constant 0 : index
    %5 = vector.load %arg5[%c0_5, %c0_6] : memref<8x128xf32, #tpu.memory_space<vmem>>, vector<8x128xf32>
    %6 = arith.index_cast %c0_i32_2 : i32 to index
    %c0_7 = arith.constant 0 : index
    %c0_8 = arith.constant 0 : index
    %7 = vector.load %arg1[%6, %c0_7, %c0_8] : memref<8x8x512xf32, #tpu.memory_space<vmem>>, vector<1x8x512xf32>
    %8 = vector.shape_cast %7 : vector<1x8x512xf32> to vector<8x512xf32>
    %9 = arith.truncf %4 : vector<8x128xf32> to vector<8x128xbf16>
    %cst = arith.constant dense<0.000000e+00> : vector<8x512xf32>
    %10 = tpu.matmul %9, %3, %cst {dimension_numbers = #tpu.dot_dimension_numbers<[1], [0], [0], [1], [0, 0, 1, 1], [], []>} : vector<8x128xbf16>, vector<128x512xbf16>, vector<8x512xf32> -> vector<8x512xf32>
    %11 = arith.addf %8, %10 : vector<8x512xf32>
    %12 = vector.extract_strided_slice %11 {offsets = [0, 0], sizes = [8, 128], strides = [1, 1]} : vector<8x512xf32> to vector<8x128xf32>
    %13 = arith.negf %12 : vector<8x128xf32>
    %14 = math.exp %13 : vector<8x128xf32>
    %cst_9 = arith.constant 1.000000e+00 : f32
    %15 = vector.broadcast %cst_9 : f32 to vector<8x128xf32>
    %16 = arith.addf %15, %14 : vector<8x128xf32>
    %17 = arith.divf %15, %16 : vector<8x128xf32>
    %18 = vector.extract_strided_slice %11 {offsets = [0, 128], sizes = [8, 128], strides = [1, 1]} : vector<8x512xf32> to vector<8x128xf32>
    %19 = arith.negf %18 : vector<8x128xf32>
    %20 = math.exp %19 : vector<8x128xf32>
    %cst_10 = arith.constant 1.000000e+00 : f32
    %21 = vector.broadcast %cst_10 : f32 to vector<8x128xf32>
    %22 = arith.addf %21, %20 : vector<8x128xf32>
    %23 = arith.divf %21, %22 : vector<8x128xf32>
    %24 = vector.extract_strided_slice %11 {offsets = [0, 256], sizes = [8, 128], strides = [1, 1]} : vector<8x512xf32> to vector<8x128xf32>
    %25 = math.tanh %24 : vector<8x128xf32>
    %26 = vector.extract_strided_slice %11 {offsets = [0, 384], sizes = [8, 128], strides = [1, 1]} : vector<8x512xf32> to vector<8x128xf32>
    %27 = arith.negf %26 : vector<8x128xf32>
    %28 = math.exp %27 : vector<8x128xf32>
    %cst_11 = arith.constant 1.000000e+00 : f32
    %29 = vector.broadcast %cst_11 : f32 to vector<8x128xf32>
    %30 = arith.addf %29, %28 : vector<8x128xf32>
    %31 = arith.divf %29, %30 : vector<8x128xf32>
    %32 = arith.mulf %23, %5 : vector<8x128xf32>
    %33 = arith.mulf %17, %25 : vector<8x128xf32>
    %34 = arith.addf %32, %33 : vector<8x128xf32>
    %35 = math.tanh %34 : vector<8x128xf32>
    %36 = arith.mulf %31, %35 : vector<8x128xf32>
    %c0_12 = arith.constant 0 : index
    %c0_13 = arith.constant 0 : index
    %37 = vector.load %arg5[%c0_12, %c0_13] : memref<8x128xf32, #tpu.memory_space<vmem>>, vector<8x128xf32>
    tpu.vector_store %arg5[%c0_12, %c0_13], %34 {strides = array<i32>} : memref<8x128xf32, #tpu.memory_space<vmem>>, vector<8x128xf32>,
    %c0_14 = arith.constant 0 : index
    %c0_15 = arith.constant 0 : index
    %38 = vector.load %arg4[%c0_14, %c0_15] : memref<8x128xf32, #tpu.memory_space<vmem>>, vector<8x128xf32>
    tpu.vector_store %arg4[%c0_14, %c0_15], %36 {strides = array<i32>} : memref<8x128xf32, #tpu.memory_space<vmem>>, vector<8x128xf32>,
    %39 = arith.truncf %36 : vector<8x128xf32> to vector<8x128xbf16>
    %40 = arith.index_cast %c0_i32_2 : i32 to index
    %c0_16 = arith.constant 0 : index
    %c0_17 = arith.constant 0 : index
    %41 = vector.load %arg3[%40, %c0_16, %c0_17] : memref<8x8x128xbf16, #tpu.memory_space<vmem>>, vector<1x8x128xbf16>
    %42 = vector.shape_cast %41 : vector<1x8x128xbf16> to vector<8x128xbf16>
    %43 = vector.shape_cast %39 : vector<8x128xbf16> to vector<1x8x128xbf16>
    tpu.vector_store %arg3[%40, %c0_16, %c0_17], %43 {strides = array<i32>} : memref<8x8x128xbf16, #tpu.memory_space<vmem>>, vector<1x8x128xbf16>,
    %c1_i32 = arith.constant 1 : i32
    %c0_18 = arith.constant 0 : index
    %c0_19 = arith.constant 0 : index
    %44 = vector.load %arg4[%c0_18, %c0_19] : memref<8x128xf32, #tpu.memory_space<vmem>>, vector<8x128xf32>
    %c0_20 = arith.constant 0 : index
    %c0_21 = arith.constant 0 : index
    %45 = vector.load %arg5[%c0_20, %c0_21] : memref<8x128xf32, #tpu.memory_space<vmem>>, vector<8x128xf32>
    %46 = arith.index_cast %c1_i32 : i32 to index
    %c0_22 = arith.constant 0 : index
    %c0_23 = arith.constant 0 : index
    %47 = vector.load %arg1[%46, %c0_22, %c0_23] : memref<8x8x512xf32, #tpu.memory_space<vmem>>, vector<1x8x512xf32>
    %48 = vector.shape_cast %47 : vector<1x8x512xf32> to vector<8x512xf32>
    %49 = arith.truncf %44 : vector<8x128xf32> to vector<8x128xbf16>
    %cst_24 = arith.constant dense<0.000000e+00> : vector<8x512xf32>
    %50 = tpu.matmul %49, %3, %cst_24 {dimension_numbers = #tpu.dot_dimension_numbers<[1], [0], [0], [1], [0, 0, 1, 1], [], []>} : vector<8x128xbf16>, vector<128x512xbf16>, vector<8x512xf32> -> vector<8x512xf32>
    %51 = arith.addf %48, %50 : vector<8x512xf32>
    %52 = vector.extract_strided_slice %51 {offsets = [0, 0], sizes = [8, 128], strides = [1, 1]} : vector<8x512xf32> to vector<8x128xf32>
    %53 = arith.negf %52 : vector<8x128xf32>
    %54 = math.exp %53 : vector<8x128xf32>
    %cst_25 = arith.constant 1.000000e+00 : f32
    %55 = vector.broadcast %cst_25 : f32 to vector<8x128xf32>
    %56 = arith.addf %55, %54 : vector<8x128xf32>
    %57 = arith.divf %55, %56 : vector<8x128xf32>
    %58 = vector.extract_strided_slice %51 {offsets = [0, 128], sizes = [8, 128], strides = [1, 1]} : vector<8x512xf32> to vector<8x128xf32>
    %59 = arith.negf %58 : vector<8x128xf32>
    %60 = math.exp %59 : vector<8x128xf32>
    %cst_26 = arith.constant 1.000000e+00 : f32
    %61 = vector.broadcast %cst_26 : f32 to vector<8x128xf32>
    %62 = arith.addf %61, %60 : vector<8x128xf32>
    %63 = arith.divf %61, %62 : vector<8x128xf32>
    %64 = vector.extract_strided_slice %51 {offsets = [0, 256], sizes = [8, 128], strides = [1, 1]} : vector<8x512xf32> to vector<8x128xf32>
    %65 = math.tanh %64 : vector<8x128xf32>
    %66 = vector.extract_strided_slice %51 {offsets = [0, 384], sizes = [8, 128], strides = [1, 1]} : vector<8x512xf32> to vector<8x128xf32>
    %67 = arith.negf %66 : vector<8x128xf32>
    %68 = math.exp %67 : vector<8x128xf32>
    %cst_27 = arith.constant 1.000000e+00 : f32
    %69 = vector.broadcast %cst_27 : f32 to vector<8x128xf32>
    %70 = arith.addf %69, %68 : vector<8x128xf32>
    %71 = arith.divf %69, %70 : vector<8x128xf32>
    %72 = arith.mulf %63, %45 : vector<8x128xf32>
    %73 = arith.mulf %57, %65 : vector<8x128xf32>
    %74 = arith.addf %72, %73 : vector<8x128xf32>
    %75 = math.tanh %74 : vector<8x128xf32>
    %76 = arith.mulf %71, %75 : vector<8x128xf32>
    %c0_28 = arith.constant 0 : index
    %c0_29 = arith.constant 0 : index
    %77 = vector.load %arg5[%c0_28, %c0_29] : memref<8x128xf32, #tpu.memory_space<vmem>>, vector<8x128xf32>
    tpu.vector_store %arg5[%c0_28, %c0_29], %74 {strides = array<i32>} : memref<8x128xf32, #tpu.memory_space<vmem>>, vector<8x128xf32>,
    %c0_30 = arith.constant 0 : index
    %c0_31 = arith.constant 0 : index
    %78 = vector.load %arg4[%c0_30, %c0_31] : memref<8x128xf32, #tpu.memory_space<vmem>>, vector<8x128xf32>
    tpu.vector_store %arg4[%c0_30, %c0_31], %76 {strides = array<i32>} : memref<8x128xf32, #tpu.memory_space<vmem>>, vector<8x128xf32>,
    %79 = arith.truncf %76 : vector<8x128xf32> to vector<8x128xbf16>
    %80 = arith.index_cast %c1_i32 : i32 to index
    %c0_32 = arith.constant 0 : index
    %c0_33 = arith.constant 0 : index
    %81 = vector.load %arg3[%80, %c0_32, %c0_33] : memref<8x8x128xbf16, #tpu.memory_space<vmem>>, vector<1x8x128xbf16>
    %82 = vector.shape_cast %81 : vector<1x8x128xbf16> to vector<8x128xbf16>
    %83 = vector.shape_cast %79 : vector<8x128xbf16> to vector<1x8x128xbf16>
    tpu.vector_store %arg3[%80, %c0_32, %c0_33], %83 {strides = array<i32>} : memref<8x8x128xbf16, #tpu.memory_space<vmem>>, vector<1x8x128xbf16>,
    %c2_i32 = arith.constant 2 : i32
    %c0_34 = arith.constant 0 : index
    %c0_35 = arith.constant 0 : index
    %84 = vector.load %arg4[%c0_34, %c0_35] : memref<8x128xf32, #tpu.memory_space<vmem>>, vector<8x128xf32>
    %c0_36 = arith.constant 0 : index
    %c0_37 = arith.constant 0 : index
    %85 = vector.load %arg5[%c0_36, %c0_37] : memref<8x128xf32, #tpu.memory_space<vmem>>, vector<8x128xf32>
    %86 = arith.index_cast %c2_i32 : i32 to index
    %c0_38 = arith.constant 0 : index
    %c0_39 = arith.constant 0 : index
    %87 = vector.load %arg1[%86, %c0_38, %c0_39] : memref<8x8x512xf32, #tpu.memory_space<vmem>>, vector<1x8x512xf32>
    %88 = vector.shape_cast %87 : vector<1x8x512xf32> to vector<8x512xf32>
    %89 = arith.truncf %84 : vector<8x128xf32> to vector<8x128xbf16>
    %cst_40 = arith.constant dense<0.000000e+00> : vector<8x512xf32>
    %90 = tpu.matmul %89, %3, %cst_40 {dimension_numbers = #tpu.dot_dimension_numbers<[1], [0], [0], [1], [0, 0, 1, 1], [], []>} : vector<8x128xbf16>, vector<128x512xbf16>, vector<8x512xf32> -> vector<8x512xf32>
    %91 = arith.addf %88, %90 : vector<8x512xf32>
    %92 = vector.extract_strided_slice %91 {offsets = [0, 0], sizes = [8, 128], strides = [1, 1]} : vector<8x512xf32> to vector<8x128xf32>
    %93 = arith.negf %92 : vector<8x128xf32>
    %94 = math.exp %93 : vector<8x128xf32>
    %cst_41 = arith.constant 1.000000e+00 : f32
    %95 = vector.broadcast %cst_41 : f32 to vector<8x128xf32>
    %96 = arith.addf %95, %94 : vector<8x128xf32>
    %97 = arith.divf %95, %96 : vector<8x128xf32>
    %98 = vector.extract_strided_slice %91 {offsets = [0, 128], sizes = [8, 128], strides = [1, 1]} : vector<8x512xf32> to vector<8x128xf32>
    %99 = arith.negf %98 : vector<8x128xf32>
    %100 = math.exp %99 : vector<8x128xf32>
    %cst_42 = arith.constant 1.000000e+00 : f32
    %101 = vector.broadcast %cst_42 : f32 to vector<8x128xf32>
    %102 = arith.addf %101, %100 : vector<8x128xf32>
    %103 = arith.divf %101, %102 : vector<8x128xf32>
    %104 = vector.extract_strided_slice %91 {offsets = [0, 256], sizes = [8, 128], strides = [1, 1]} : vector<8x512xf32> to vector<8x128xf32>
    %105 = math.tanh %104 : vector<8x128xf32>
    %106 = vector.extract_strided_slice %91 {offsets = [0, 384], sizes = [8, 128], strides = [1, 1]} : vector<8x512xf32> to vector<8x128xf32>
    %107 = arith.negf %106 : vector<8x128xf32>
    %108 = math.exp %107 : vector<8x128xf32>
    %cst_43 = arith.constant 1.000000e+00 : f32
    %109 = vector.broadcast %cst_43 : f32 to vector<8x128xf32>
    %110 = arith.addf %109, %108 : vector<8x128xf32>
    %111 = arith.divf %109, %110 : vector<8x128xf32>
    %112 = arith.mulf %103, %85 : vector<8x128xf32>
    %113 = arith.mulf %97, %105 : vector<8x128xf32>
    %114 = arith.addf %112, %113 : vector<8x128xf32>
    %115 = math.tanh %114 : vector<8x128xf32>
    %116 = arith.mulf %111, %115 : vector<8x128xf32>
    %c0_44 = arith.constant 0 : index
    %c0_45 = arith.constant 0 : index
    %117 = vector.load %arg5[%c0_44, %c0_45] : memref<8x128xf32, #tpu.memory_space<vmem>>, vector<8x128xf32>
    tpu.vector_store %arg5[%c0_44, %c0_45], %114 {strides = array<i32>} : memref<8x128xf32, #tpu.memory_space<vmem>>, vector<8x128xf32>,
    %c0_46 = arith.constant 0 : index
    %c0_47 = arith.constant 0 : index
    %118 = vector.load %arg4[%c0_46, %c0_47] : memref<8x128xf32, #tpu.memory_space<vmem>>, vector<8x128xf32>
    tpu.vector_store %arg4[%c0_46, %c0_47], %116 {strides = array<i32>} : memref<8x128xf32, #tpu.memory_space<vmem>>, vector<8x128xf32>,
    %119 = arith.truncf %116 : vector<8x128xf32> to vector<8x128xbf16>
    %120 = arith.index_cast %c2_i32 : i32 to index
    %c0_48 = arith.constant 0 : index
    %c0_49 = arith.constant 0 : index
    %121 = vector.load %arg3[%120, %c0_48, %c0_49] : memref<8x8x128xbf16, #tpu.memory_space<vmem>>, vector<1x8x128xbf16>
    %122 = vector.shape_cast %121 : vector<1x8x128xbf16> to vector<8x128xbf16>
    %123 = vector.shape_cast %119 : vector<8x128xbf16> to vector<1x8x128xbf16>
    tpu.vector_store %arg3[%120, %c0_48, %c0_49], %123 {strides = array<i32>} : memref<8x8x128xbf16, #tpu.memory_space<vmem>>, vector<1x8x128xbf16>,
    %c3_i32 = arith.constant 3 : i32
    %c0_50 = arith.constant 0 : index
    %c0_51 = arith.constant 0 : index
    %124 = vector.load %arg4[%c0_50, %c0_51] : memref<8x128xf32, #tpu.memory_space<vmem>>, vector<8x128xf32>
    %c0_52 = arith.constant 0 : index
    %c0_53 = arith.constant 0 : index
    %125 = vector.load %arg5[%c0_52, %c0_53] : memref<8x128xf32, #tpu.memory_space<vmem>>, vector<8x128xf32>
    %126 = arith.index_cast %c3_i32 : i32 to index
    %c0_54 = arith.constant 0 : index
    %c0_55 = arith.constant 0 : index
    %127 = vector.load %arg1[%126, %c0_54, %c0_55] : memref<8x8x512xf32, #tpu.memory_space<vmem>>, vector<1x8x512xf32>
    %128 = vector.shape_cast %127 : vector<1x8x512xf32> to vector<8x512xf32>
    %129 = arith.truncf %124 : vector<8x128xf32> to vector<8x128xbf16>
    %cst_56 = arith.constant dense<0.000000e+00> : vector<8x512xf32>
    %130 = tpu.matmul %129, %3, %cst_56 {dimension_numbers = #tpu.dot_dimension_numbers<[1], [0], [0], [1], [0, 0, 1, 1], [], []>} : vector<8x128xbf16>, vector<128x512xbf16>, vector<8x512xf32> -> vector<8x512xf32>
    %131 = arith.addf %128, %130 : vector<8x512xf32>
    %132 = vector.extract_strided_slice %131 {offsets = [0, 0], sizes = [8, 128], strides = [1, 1]} : vector<8x512xf32> to vector<8x128xf32>
    %133 = arith.negf %132 : vector<8x128xf32>
    %134 = math.exp %133 : vector<8x128xf32>
    %cst_57 = arith.constant 1.000000e+00 : f32
    %135 = vector.broadcast %cst_57 : f32 to vector<8x128xf32>
    %136 = arith.addf %135, %134 : vector<8x128xf32>
    %137 = arith.divf %135, %136 : vector<8x128xf32>
    %138 = vector.extract_strided_slice %131 {offsets = [0, 128], sizes = [8, 128], strides = [1, 1]} : vector<8x512xf32> to vector<8x128xf32>
    %139 = arith.negf %138 : vector<8x128xf32>
    %140 = math.exp %139 : vector<8x128xf32>
    %cst_58 = arith.constant 1.000000e+00 : f32
    %141 = vector.broadcast %cst_58 : f32 to vector<8x128xf32>
    %142 = arith.addf %141, %140 : vector<8x128xf32>
    %143 = arith.divf %141, %142 : vector<8x128xf32>
    %144 = vector.extract_strided_slice %131 {offsets = [0, 256], sizes = [8, 128], strides = [1, 1]} : vector<8x512xf32> to vector<8x128xf32>
    %145 = math.tanh %144 : vector<8x128xf32>
    %146 = vector.extract_strided_slice %131 {offsets = [0, 384], sizes = [8, 128], strides = [1, 1]} : vector<8x512xf32> to vector<8x128xf32>
    %147 = arith.negf %146 : vector<8x128xf32>
    %148 = math.exp %147 : vector<8x128xf32>
    %cst_59 = arith.constant 1.000000e+00 : f32
    %149 = vector.broadcast %cst_59 : f32 to vector<8x128xf32>
    %150 = arith.addf %149, %148 : vector<8x128xf32>
    %151 = arith.divf %149, %150 : vector<8x128xf32>
    %152 = arith.mulf %143, %125 : vector<8x128xf32>
    %153 = arith.mulf %137, %145 : vector<8x128xf32>
    %154 = arith.addf %152, %153 : vector<8x128xf32>
    %155 = math.tanh %154 : vector<8x128xf32>
    %156 = arith.mulf %151, %155 : vector<8x128xf32>
    %c0_60 = arith.constant 0 : index
    %c0_61 = arith.constant 0 : index
    %157 = vector.load %arg5[%c0_60, %c0_61] : memref<8x128xf32, #tpu.memory_space<vmem>>, vector<8x128xf32>
    tpu.vector_store %arg5[%c0_60, %c0_61], %154 {strides = array<i32>} : memref<8x128xf32, #tpu.memory_space<vmem>>, vector<8x128xf32>,
    %c0_62 = arith.constant 0 : index
    %c0_63 = arith.constant 0 : index
    %158 = vector.load %arg4[%c0_62, %c0_63] : memref<8x128xf32, #tpu.memory_space<vmem>>, vector<8x128xf32>
    tpu.vector_store %arg4[%c0_62, %c0_63], %156 {strides = array<i32>} : memref<8x128xf32, #tpu.memory_space<vmem>>, vector<8x128xf32>,
    %159 = arith.truncf %156 : vector<8x128xf32> to vector<8x128xbf16>
    %160 = arith.index_cast %c3_i32 : i32 to index
    %c0_64 = arith.constant 0 : index
    %c0_65 = arith.constant 0 : index
    %161 = vector.load %arg3[%160, %c0_64, %c0_65] : memref<8x8x128xbf16, #tpu.memory_space<vmem>>, vector<1x8x128xbf16>
    %162 = vector.shape_cast %161 : vector<1x8x128xbf16> to vector<8x128xbf16>
    %163 = vector.shape_cast %159 : vector<8x128xbf16> to vector<1x8x128xbf16>
    tpu.vector_store %arg3[%160, %c0_64, %c0_65], %163 {strides = array<i32>} : memref<8x8x128xbf16, #tpu.memory_space<vmem>>, vector<1x8x128xbf16>,
    %c4_i32 = arith.constant 4 : i32
    %c0_66 = arith.constant 0 : index
    %c0_67 = arith.constant 0 : index
    %164 = vector.load %arg4[%c0_66, %c0_67] : memref<8x128xf32, #tpu.memory_space<vmem>>, vector<8x128xf32>
    %c0_68 = arith.constant 0 : index
    %c0_69 = arith.constant 0 : index
    %165 = vector.load %arg5[%c0_68, %c0_69] : memref<8x128xf32, #tpu.memory_space<vmem>>, vector<8x128xf32>
    %166 = arith.index_cast %c4_i32 : i32 to index
    %c0_70 = arith.constant 0 : index
    %c0_71 = arith.constant 0 : index
    %167 = vector.load %arg1[%166, %c0_70, %c0_71] : memref<8x8x512xf32, #tpu.memory_space<vmem>>, vector<1x8x512xf32>
    %168 = vector.shape_cast %167 : vector<1x8x512xf32> to vector<8x512xf32>
    %169 = arith.truncf %164 : vector<8x128xf32> to vector<8x128xbf16>
    %cst_72 = arith.constant dense<0.000000e+00> : vector<8x512xf32>
    %170 = tpu.matmul %169, %3, %cst_72 {dimension_numbers = #tpu.dot_dimension_numbers<[1], [0], [0], [1], [0, 0, 1, 1], [], []>} : vector<8x128xbf16>, vector<128x512xbf16>, vector<8x512xf32> -> vector<8x512xf32>
    %171 = arith.addf %168, %170 : vector<8x512xf32>
    %172 = vector.extract_strided_slice %171 {offsets = [0, 0], sizes = [8, 128], strides = [1, 1]} : vector<8x512xf32> to vector<8x128xf32>
    %173 = arith.negf %172 : vector<8x128xf32>
    %174 = math.exp %173 : vector<8x128xf32>
    %cst_73 = arith.constant 1.000000e+00 : f32
    %175 = vector.broadcast %cst_73 : f32 to vector<8x128xf32>
    %176 = arith.addf %175, %174 : vector<8x128xf32>
    %177 = arith.divf %175, %176 : vector<8x128xf32>
    %178 = vector.extract_strided_slice %171 {offsets = [0, 128], sizes = [8, 128], strides = [1, 1]} : vector<8x512xf32> to vector<8x128xf32>
    %179 = arith.negf %178 : vector<8x128xf32>
    %180 = math.exp %179 : vector<8x128xf32>
    %cst_74 = arith.constant 1.000000e+00 : f32
    %181 = vector.broadcast %cst_74 : f32 to vector<8x128xf32>
    %182 = arith.addf %181, %180 : vector<8x128xf32>
    %183 = arith.divf %181, %182 : vector<8x128xf32>
    %184 = vector.extract_strided_slice %171 {offsets = [0, 256], sizes = [8, 128], strides = [1, 1]} : vector<8x512xf32> to vector<8x128xf32>
    %185 = math.tanh %184 : vector<8x128xf32>
    %186 = vector.extract_strided_slice %171 {offsets = [0, 384], sizes = [8, 128], strides = [1, 1]} : vector<8x512xf32> to vector<8x128xf32>
    %187 = arith.negf %186 : vector<8x128xf32>
    %188 = math.exp %187 : vector<8x128xf32>
    %cst_75 = arith.constant 1.000000e+00 : f32
    %189 = vector.broadcast %cst_75 : f32 to vector<8x128xf32>
    %190 = arith.addf %189, %188 : vector<8x128xf32>
    %191 = arith.divf %189, %190 : vector<8x128xf32>
    %192 = arith.mulf %183, %165 : vector<8x128xf32>
    %193 = arith.mulf %177, %185 : vector<8x128xf32>
    %194 = arith.addf %192, %193 : vector<8x128xf32>
    %195 = math.tanh %194 : vector<8x128xf32>
    %196 = arith.mulf %191, %195 : vector<8x128xf32>
    %c0_76 = arith.constant 0 : index
    %c0_77 = arith.constant 0 : index
    %197 = vector.load %arg5[%c0_76, %c0_77] : memref<8x128xf32, #tpu.memory_space<vmem>>, vector<8x128xf32>
    tpu.vector_store %arg5[%c0_76, %c0_77], %194 {strides = array<i32>} : memref<8x128xf32, #tpu.memory_space<vmem>>, vector<8x128xf32>,
    %c0_78 = arith.constant 0 : index
    %c0_79 = arith.constant 0 : index
    %198 = vector.load %arg4[%c0_78, %c0_79] : memref<8x128xf32, #tpu.memory_space<vmem>>, vector<8x128xf32>
    tpu.vector_store %arg4[%c0_78, %c0_79], %196 {strides = array<i32>} : memref<8x128xf32, #tpu.memory_space<vmem>>, vector<8x128xf32>,
    %199 = arith.truncf %196 : vector<8x128xf32> to vector<8x128xbf16>
    %200 = arith.index_cast %c4_i32 : i32 to index
    %c0_80 = arith.constant 0 : index
    %c0_81 = arith.constant 0 : index
    %201 = vector.load %arg3[%200, %c0_80, %c0_81] : memref<8x8x128xbf16, #tpu.memory_space<vmem>>, vector<1x8x128xbf16>
    %202 = vector.shape_cast %201 : vector<1x8x128xbf16> to vector<8x128xbf16>
    %203 = vector.shape_cast %199 : vector<8x128xbf16> to vector<1x8x128xbf16>
    tpu.vector_store %arg3[%200, %c0_80, %c0_81], %203 {strides = array<i32>} : memref<8x8x128xbf16, #tpu.memory_space<vmem>>, vector<1x8x128xbf16>,
    %c5_i32 = arith.constant 5 : i32
    %c0_82 = arith.constant 0 : index
    %c0_83 = arith.constant 0 : index
    %204 = vector.load %arg4[%c0_82, %c0_83] : memref<8x128xf32, #tpu.memory_space<vmem>>, vector<8x128xf32>
    %c0_84 = arith.constant 0 : index
    %c0_85 = arith.constant 0 : index
    %205 = vector.load %arg5[%c0_84, %c0_85] : memref<8x128xf32, #tpu.memory_space<vmem>>, vector<8x128xf32>
    %206 = arith.index_cast %c5_i32 : i32 to index
    %c0_86 = arith.constant 0 : index
    %c0_87 = arith.constant 0 : index
    %207 = vector.load %arg1[%206, %c0_86, %c0_87] : memref<8x8x512xf32, #tpu.memory_space<vmem>>, vector<1x8x512xf32>
    %208 = vector.shape_cast %207 : vector<1x8x512xf32> to vector<8x512xf32>
    %209 = arith.truncf %204 : vector<8x128xf32> to vector<8x128xbf16>
    %cst_88 = arith.constant dense<0.000000e+00> : vector<8x512xf32>
    %210 = tpu.matmul %209, %3, %cst_88 {dimension_numbers = #tpu.dot_dimension_numbers<[1], [0], [0], [1], [0, 0, 1, 1], [], []>} : vector<8x128xbf16>, vector<128x512xbf16>, vector<8x512xf32> -> vector<8x512xf32>
    %211 = arith.addf %208, %210 : vector<8x512xf32>
    %212 = vector.extract_strided_slice %211 {offsets = [0, 0], sizes = [8, 128], strides = [1, 1]} : vector<8x512xf32> to vector<8x128xf32>
    %213 = arith.negf %212 : vector<8x128xf32>
    %214 = math.exp %213 : vector<8x128xf32>
    %cst_89 = arith.constant 1.000000e+00 : f32
    %215 = vector.broadcast %cst_89 : f32 to vector<8x128xf32>
    %216 = arith.addf %215, %214 : vector<8x128xf32>
    %217 = arith.divf %215, %216 : vector<8x128xf32>
    %218 = vector.extract_strided_slice %211 {offsets = [0, 128], sizes = [8, 128], strides = [1, 1]} : vector<8x512xf32> to vector<8x128xf32>
    %219 = arith.negf %218 : vector<8x128xf32>
    %220 = math.exp %219 : vector<8x128xf32>
    %cst_90 = arith.constant 1.000000e+00 : f32
    %221 = vector.broadcast %cst_90 : f32 to vector<8x128xf32>
    %222 = arith.addf %221, %220 : vector<8x128xf32>
    %223 = arith.divf %221, %222 : vector<8x128xf32>
    %224 = vector.extract_strided_slice %211 {offsets = [0, 256], sizes = [8, 128], strides = [1, 1]} : vector<8x512xf32> to vector<8x128xf32>
    %225 = math.tanh %224 : vector<8x128xf32>
    %226 = vector.extract_strided_slice %211 {offsets = [0, 384], sizes = [8, 128], strides = [1, 1]} : vector<8x512xf32> to vector<8x128xf32>
    %227 = arith.negf %226 : vector<8x128xf32>
    %228 = math.exp %227 : vector<8x128xf32>
    %cst_91 = arith.constant 1.000000e+00 : f32
    %229 = vector.broadcast %cst_91 : f32 to vector<8x128xf32>
    %230 = arith.addf %229, %228 : vector<8x128xf32>
    %231 = arith.divf %229, %230 : vector<8x128xf32>
    %232 = arith.mulf %223, %205 : vector<8x128xf32>
    %233 = arith.mulf %217, %225 : vector<8x128xf32>
    %234 = arith.addf %232, %233 : vector<8x128xf32>
    %235 = math.tanh %234 : vector<8x128xf32>
    %236 = arith.mulf %231, %235 : vector<8x128xf32>
    %c0_92 = arith.constant 0 : index
    %c0_93 = arith.constant 0 : index
    %237 = vector.load %arg5[%c0_92, %c0_93] : memref<8x128xf32, #tpu.memory_space<vmem>>, vector<8x128xf32>
    tpu.vector_store %arg5[%c0_92, %c0_93], %234 {strides = array<i32>} : memref<8x128xf32, #tpu.memory_space<vmem>>, vector<8x128xf32>,
    %c0_94 = arith.constant 0 : index
    %c0_95 = arith.constant 0 : index
    %238 = vector.load %arg4[%c0_94, %c0_95] : memref<8x128xf32, #tpu.memory_space<vmem>>, vector<8x128xf32>
    tpu.vector_store %arg4[%c0_94, %c0_95], %236 {strides = array<i32>} : memref<8x128xf32, #tpu.memory_space<vmem>>, vector<8x128xf32>,
    %239 = arith.truncf %236 : vector<8x128xf32> to vector<8x128xbf16>
    %240 = arith.index_cast %c5_i32 : i32 to index
    %c0_96 = arith.constant 0 : index
    %c0_97 = arith.constant 0 : index
    %241 = vector.load %arg3[%240, %c0_96, %c0_97] : memref<8x8x128xbf16, #tpu.memory_space<vmem>>, vector<1x8x128xbf16>
    %242 = vector.shape_cast %241 : vector<1x8x128xbf16> to vector<8x128xbf16>
    %243 = vector.shape_cast %239 : vector<8x128xbf16> to vector<1x8x128xbf16>
    tpu.vector_store %arg3[%240, %c0_96, %c0_97], %243 {strides = array<i32>} : memref<8x8x128xbf16, #tpu.memory_space<vmem>>, vector<1x8x128xbf16>,
    %c6_i32 = arith.constant 6 : i32
    %c0_98 = arith.constant 0 : index
    %c0_99 = arith.constant 0 : index
    %244 = vector.load %arg4[%c0_98, %c0_99] : memref<8x128xf32, #tpu.memory_space<vmem>>, vector<8x128xf32>
    %c0_100 = arith.constant 0 : index
    %c0_101 = arith.constant 0 : index
    %245 = vector.load %arg5[%c0_100, %c0_101] : memref<8x128xf32, #tpu.memory_space<vmem>>, vector<8x128xf32>
    %246 = arith.index_cast %c6_i32 : i32 to index
    %c0_102 = arith.constant 0 : index
    %c0_103 = arith.constant 0 : index
    %247 = vector.load %arg1[%246, %c0_102, %c0_103] : memref<8x8x512xf32, #tpu.memory_space<vmem>>, vector<1x8x512xf32>
    %248 = vector.shape_cast %247 : vector<1x8x512xf32> to vector<8x512xf32>
    %249 = arith.truncf %244 : vector<8x128xf32> to vector<8x128xbf16>
    %cst_104 = arith.constant dense<0.000000e+00> : vector<8x512xf32>
    %250 = tpu.matmul %249, %3, %cst_104 {dimension_numbers = #tpu.dot_dimension_numbers<[1], [0], [0], [1], [0, 0, 1, 1], [], []>} : vector<8x128xbf16>, vector<128x512xbf16>, vector<8x512xf32> -> vector<8x512xf32>
    %251 = arith.addf %248, %250 : vector<8x512xf32>
    %252 = vector.extract_strided_slice %251 {offsets = [0, 0], sizes = [8, 128], strides = [1, 1]} : vector<8x512xf32> to vector<8x128xf32>
    %253 = arith.negf %252 : vector<8x128xf32>
    %254 = math.exp %253 : vector<8x128xf32>
    %cst_105 = arith.constant 1.000000e+00 : f32
    %255 = vector.broadcast %cst_105 : f32 to vector<8x128xf32>
    %256 = arith.addf %255, %254 : vector<8x128xf32>
    %257 = arith.divf %255, %256 : vector<8x128xf32>
    %258 = vector.extract_strided_slice %251 {offsets = [0, 128], sizes = [8, 128], strides = [1, 1]} : vector<8x512xf32> to vector<8x128xf32>
    %259 = arith.negf %258 : vector<8x128xf32>
    %260 = math.exp %259 : vector<8x128xf32>
    %cst_106 = arith.constant 1.000000e+00 : f32
    %261 = vector.broadcast %cst_106 : f32 to vector<8x128xf32>
    %262 = arith.addf %261, %260 : vector<8x128xf32>
    %263 = arith.divf %261, %262 : vector<8x128xf32>
    %264 = vector.extract_strided_slice %251 {offsets = [0, 256], sizes = [8, 128], strides = [1, 1]} : vector<8x512xf32> to vector<8x128xf32>
    %265 = math.tanh %264 : vector<8x128xf32>
    %266 = vector.extract_strided_slice %251 {offsets = [0, 384], sizes = [8, 128], strides = [1, 1]} : vector<8x512xf32> to vector<8x128xf32>
    %267 = arith.negf %266 : vector<8x128xf32>
    %268 = math.exp %267 : vector<8x128xf32>
    %cst_107 = arith.constant 1.000000e+00 : f32
    %269 = vector.broadcast %cst_107 : f32 to vector<8x128xf32>
    %270 = arith.addf %269, %268 : vector<8x128xf32>
    %271 = arith.divf %269, %270 : vector<8x128xf32>
    %272 = arith.mulf %263, %245 : vector<8x128xf32>
    %273 = arith.mulf %257, %265 : vector<8x128xf32>
    %274 = arith.addf %272, %273 : vector<8x128xf32>
    %275 = math.tanh %274 : vector<8x128xf32>
    %276 = arith.mulf %271, %275 : vector<8x128xf32>
    %c0_108 = arith.constant 0 : index
    %c0_109 = arith.constant 0 : index
    %277 = vector.load %arg5[%c0_108, %c0_109] : memref<8x128xf32, #tpu.memory_space<vmem>>, vector<8x128xf32>
    tpu.vector_store %arg5[%c0_108, %c0_109], %274 {strides = array<i32>} : memref<8x128xf32, #tpu.memory_space<vmem>>, vector<8x128xf32>,
    %c0_110 = arith.constant 0 : index
    %c0_111 = arith.constant 0 : index
    %278 = vector.load %arg4[%c0_110, %c0_111] : memref<8x128xf32, #tpu.memory_space<vmem>>, vector<8x128xf32>
    tpu.vector_store %arg4[%c0_110, %c0_111], %276 {strides = array<i32>} : memref<8x128xf32, #tpu.memory_space<vmem>>, vector<8x128xf32>,
    %279 = arith.truncf %276 : vector<8x128xf32> to vector<8x128xbf16>
    %280 = arith.index_cast %c6_i32 : i32 to index
    %c0_112 = arith.constant 0 : index
    %c0_113 = arith.constant 0 : index
    %281 = vector.load %arg3[%280, %c0_112, %c0_113] : memref<8x8x128xbf16, #tpu.memory_space<vmem>>, vector<1x8x128xbf16>
    %282 = vector.shape_cast %281 : vector<1x8x128xbf16> to vector<8x128xbf16>
    %283 = vector.shape_cast %279 : vector<8x128xbf16> to vector<1x8x128xbf16>
    tpu.vector_store %arg3[%280, %c0_112, %c0_113], %283 {strides = array<i32>} : memref<8x8x128xbf16, #tpu.memory_space<vmem>>, vector<1x8x128xbf16>,
    %c7_i32 = arith.constant 7 : i32
    %c0_114 = arith.constant 0 : index
    %c0_115 = arith.constant 0 : index
    %284 = vector.load %arg4[%c0_114, %c0_115] : memref<8x128xf32, #tpu.memory_space<vmem>>, vector<8x128xf32>
    %c0_116 = arith.constant 0 : index
    %c0_117 = arith.constant 0 : index
    %285 = vector.load %arg5[%c0_116, %c0_117] : memref<8x128xf32, #tpu.memory_space<vmem>>, vector<8x128xf32>
    %286 = arith.index_cast %c7_i32 : i32 to index
    %c0_118 = arith.constant 0 : index
    %c0_119 = arith.constant 0 : index
    %287 = vector.load %arg1[%286, %c0_118, %c0_119] : memref<8x8x512xf32, #tpu.memory_space<vmem>>, vector<1x8x512xf32>
    %288 = vector.shape_cast %287 : vector<1x8x512xf32> to vector<8x512xf32>
    %289 = arith.truncf %284 : vector<8x128xf32> to vector<8x128xbf16>
    %cst_120 = arith.constant dense<0.000000e+00> : vector<8x512xf32>
    %290 = tpu.matmul %289, %3, %cst_120 {dimension_numbers = #tpu.dot_dimension_numbers<[1], [0], [0], [1], [0, 0, 1, 1], [], []>} : vector<8x128xbf16>, vector<128x512xbf16>, vector<8x512xf32> -> vector<8x512xf32>
    %291 = arith.addf %288, %290 : vector<8x512xf32>
    %292 = vector.extract_strided_slice %291 {offsets = [0, 0], sizes = [8, 128], strides = [1, 1]} : vector<8x512xf32> to vector<8x128xf32>
    %293 = arith.negf %292 : vector<8x128xf32>
    %294 = math.exp %293 : vector<8x128xf32>
    %cst_121 = arith.constant 1.000000e+00 : f32
    %295 = vector.broadcast %cst_121 : f32 to vector<8x128xf32>
    %296 = arith.addf %295, %294 : vector<8x128xf32>
    %297 = arith.divf %295, %296 : vector<8x128xf32>
    %298 = vector.extract_strided_slice %291 {offsets = [0, 128], sizes = [8, 128], strides = [1, 1]} : vector<8x512xf32> to vector<8x128xf32>
    %299 = arith.negf %298 : vector<8x128xf32>
    %300 = math.exp %299 : vector<8x128xf32>
    %cst_122 = arith.constant 1.000000e+00 : f32
    %301 = vector.broadcast %cst_122 : f32 to vector<8x128xf32>
    %302 = arith.addf %301, %300 : vector<8x128xf32>
    %303 = arith.divf %301, %302 : vector<8x128xf32>
    %304 = vector.extract_strided_slice %291 {offsets = [0, 256], sizes = [8, 128], strides = [1, 1]} : vector<8x512xf32> to vector<8x128xf32>
    %305 = math.tanh %304 : vector<8x128xf32>
    %306 = vector.extract_strided_slice %291 {offsets = [0, 384], sizes = [8, 128], strides = [1, 1]} : vector<8x512xf32> to vector<8x128xf32>
    %307 = arith.negf %306 : vector<8x128xf32>
    %308 = math.exp %307 : vector<8x128xf32>
    %cst_123 = arith.constant 1.000000e+00 : f32
    %309 = vector.broadcast %cst_123 : f32 to vector<8x128xf32>
    %310 = arith.addf %309, %308 : vector<8x128xf32>
    %311 = arith.divf %309, %310 : vector<8x128xf32>
    %312 = arith.mulf %303, %285 : vector<8x128xf32>
    %313 = arith.mulf %297, %305 : vector<8x128xf32>
    %314 = arith.addf %312, %313 : vector<8x128xf32>
    %315 = math.tanh %314 : vector<8x128xf32>
    %316 = arith.mulf %311, %315 : vector<8x128xf32>
    %c0_124 = arith.constant 0 : index
    %c0_125 = arith.constant 0 : index
    %317 = vector.load %arg5[%c0_124, %c0_125] : memref<8x128xf32, #tpu.memory_space<vmem>>, vector<8x128xf32>
    tpu.vector_store %arg5[%c0_124, %c0_125], %314 {strides = array<i32>} : memref<8x128xf32, #tpu.memory_space<vmem>>, vector<8x128xf32>,
    %c0_126 = arith.constant 0 : index
    %c0_127 = arith.constant 0 : index
    %318 = vector.load %arg4[%c0_126, %c0_127] : memref<8x128xf32, #tpu.memory_space<vmem>>, vector<8x128xf32>
    tpu.vector_store %arg4[%c0_126, %c0_127], %316 {strides = array<i32>} : memref<8x128xf32, #tpu.memory_space<vmem>>, vector<8x128xf32>,
    %319 = arith.truncf %316 : vector<8x128xf32> to vector<8x128xbf16>
    %320 = arith.index_cast %c7_i32 : i32 to index
    %c0_128 = arith.constant 0 : index
    %c0_129 = arith.constant 0 : index
    %321 = vector.load %arg3[%320, %c0_128, %c0_129] : memref<8x8x128xbf16, #tpu.memory_space<vmem>>, vector<1x8x128xbf16>
    %322 = vector.shape_cast %321 : vector<1x8x128xbf16> to vector<8x128xbf16>
    %323 = vector.shape_cast %319 : vector<8x128xbf16> to vector<1x8x128xbf16>
    tpu.vector_store %arg3[%320, %c0_128, %c0_129], %323 {strides = array<i32>} : memref<8x8x128xbf16, #tpu.memory_space<vmem>>, vector<1x8x128xbf16>,
    %c8_i32 = arith.constant 8 : i32
    return
  }
  func.func @transform_0(%arg0: i32) -> (i32, i32, i32) {
    %c0_i32 = arith.constant 0 : i32
    %c0_i32_0 = arith.constant 0 : i32
    %c0_i32_1 = arith.constant 0 : i32
    return %arg0, %c0_i32, %c0_i32_0 : i32, i32, i32
  }
  func.func @transform_1(%arg0: i32) -> (i32, i32) {
    %c0_i32 = arith.constant 0 : i32
    %c0_i32_0 = arith.constant 0 : i32
    %c0_i32_1 = arith.constant 0 : i32
    return %c0_i32, %c0_i32_0 : i32, i32
  }
  func.func @transform_2(%arg0: i32) -> (i32, i32, i32) {
    %c0_i32 = arith.constant 0 : i32
    %c0_i32_0 = arith.constant 0 : i32
    %c0_i32_1 = arith.constant 0 : i32
    return %arg0, %c0_i32, %c0_i32_0 : i32, i32, i32
  }
}

</mosaic_0001>

<llo_original>
// kernel: tpu_custom_call.1
$region0: #{tpu_custom_call.1}
  #allocation0 [shape = 'u32[]', space=smem, size = 0x4, offset = 0x4, fixed_abs, tag = 'smem constant byte address 0x4 - core index']
  #allocation1 [shape = 'u32[72,128]{1,0:T(1,128)}', space=vmem, size = 0x9000, scoped, tag = 'internal scratch']
  #allocation2 [shape = 'f32[8,128]{1,0:T(8,128)}', space=vmem, size = 0x1000, scoped, tag = 'scratch operand']
  #allocation3 [shape = 'f32[8,128]{1,0:T(8,128)}', space=vmem, size = 0x1000, scoped, tag = 'scratch operand']
  %s0 = inlined_call_operand.hbm [shape: f32[8,8,512], index: 0, kind: input, shape index: {}]
  %s1 = inlined_call_operand.hbm [shape: bf16[128,512], index: 1, kind: input, shape index: {}]
  %s2 = inlined_call_operand.hbm [shape: bf16[8,8,128], index: 2, kind: output, shape index: {}]
  %s3 = sld [smem:[#allocation0]]
  $region30: #{tpu_custom_call.1} parent=0
    _
  %s5 = ssub.s32 1, %s3
  %s6 = scalar_select 0, %s5, %s3
  $region1: #{tpu_custom_call.1} parent=0
    #allocation4 [shape = 'u8[131072]{0}', space=vmem, size = 0x20000, scoped, tag = 'input window, operand 0, single buffered']
    #allocation5 [shape = 's32[1]{0}', space=sflag, size = 0x4, scoped, tag = 'scoped memory for tpu_custom_call.1']
    #allocation6 [shape = 's32[1]{0}', space=sflag, size = 0x4, scoped, tag = 'scoped memory for tpu_custom_call.1']
    #allocation7 [shape = 'u8[131072]{0}', space=vmem, size = 0x20000, scoped, tag = 'input window, operand 1, single buffered']
    #allocation8 [shape = 's32[1]{0}', space=sflag, size = 0x4, scoped, tag = 'scoped memory for tpu_custom_call.1']
    #allocation9 [shape = 'u8[16384]{0}', space=vmem, size = 0x4000, scoped, tag = 'output window, operand 0, single buffered']
    %7 = vsyncpa [#allocation5], 0
    %8 = vsyncpa [#allocation8], 0
    %9 = vsyncpa [#allocation6], 0
    // Predicated region
    $region2: #{tpu_custom_call.1} parent=1 // pred_check
      _
    $region3: #{tpu_custom_call.1} parent=1 // pred_check_branch
      %11 = sbr.rel (0) target = $region5
    $region4: #{tpu_custom_call.1} parent=1 // pred_region
      %13 = vsyncadd [#allocation5], 0
      %s14 = sshll.u32 %s0, 4
      %s15 = int_to_ptr.hbm [resolvable:$true] %s14
      %s16 = sshll.u32 [#allocation4], 4
      %s17 = int_to_ptr.vmem [resolvable:$true] %s16
      %22 = dma.hbm_to_vmem [thread:$0]  %s15, 4096, %s17, [#allocation5], 512, 512, 32
    $region5: #{tpu_custom_call.1} parent=1 // pred_fallthru
      _
    // Predicated region
    $region6: #{tpu_custom_call.1} parent=1 // pred_check
      _
    $region7: #{tpu_custom_call.1} parent=1 // pred_check_branch
      %24 = sbr.rel (0) target = $region9
    $region8: #{tpu_custom_call.1} parent=1 // pred_region
      %26 = vsyncadd [#allocation8], 0
      %s27 = sshll.u32 %s1, 4
      %s28 = int_to_ptr.hbm [resolvable:$true] %s27
      %s29 = sshll.u32 [#allocation7], 4
      %s30 = int_to_ptr.vmem [resolvable:$true] %s29
      %35 = dma.hbm_to_vmem [thread:$0]  %s28, 4096, %s30, [#allocation8], 256, 256, 16
    $region9: #{tpu_custom_call.1} parent=1 // pred_fallthru
      _
    // Predicated region
    $region10: #{tpu_custom_call.1} parent=1 // pred_check
      _
    $region11: #{tpu_custom_call.1} parent=1 // pred_check_branch
      %37 = sbr.rel (0) target = $region13
    $region12: #{tpu_custom_call.1} parent=1 // pred_region
      %39 = dma.done [#allocation5], 4096
    $region13: #{tpu_custom_call.1} parent=1 // pred_fallthru
      _
    // Predicated region
    $region14: #{tpu_custom_call.1} parent=1 // pred_check
      _
    $region15: #{tpu_custom_call.1} parent=1 // pred_check_branch
      %41 = sbr.rel (0) target = $region17
    $region16: #{tpu_custom_call.1} parent=1 // pred_region
      %43 = dma.done [#allocation8], 4096
    $region17: #{tpu_custom_call.1} parent=1 // pred_fallthru
      _
    %p44 = scmp.eq.s32.totalorder 0, 0
    // Predicated region
    $region18: #{tpu_custom_call.1} parent=1 // pred_check
      %p45 = pneg %p44
    $region19: #{tpu_custom_call.1} parent=1 // pred_check_branch
      %47 = sbr.rel (%p45) target = $region21
    $region20: #{tpu_custom_call.1} parent=1 // pred_region
      %48 = vst [vmem:[#allocation2] sm:$0xff] 0.0
      %49 = vst [vmem:[#allocation3] sm:$0xff] 0.0
    $region21: #{tpu_custom_call.1} parent=1 // pred_fallthru
      _
    %v50 = vld [vmem:[#allocation7] sm:$0xff]
    %v51 = vld [vmem:[#allocation7 + $0x8] sm:$0xff]
    %v52 = vld [vmem:[#allocation7 + $0x10] sm:$0xff]
    %v53 = vld [vmem:[#allocation7 + $0x18] sm:$0xff]
    %v54 = vld [vmem:[#allocation7 + $0x20] sm:$0xff]
    %v55 = vld [vmem:[#allocation7 + $0x28] sm:$0xff]
    %v56 = vld [vmem:[#allocation7 + $0x30] sm:$0xff]
    %v57 = vld [vmem:[#allocation7 + $0x38] sm:$0xff]
    %v58 = vld [vmem:[#allocation7 + $0x40] sm:$0xff]
    %v59 = vld [vmem:[#allocation7 + $0x48] sm:$0xff]
    %v60 = vld [vmem:[#allocation7 + $0x50] sm:$0xff]
    %v61 = vld [vmem:[#allocation7 + $0x58] sm:$0xff]
    %v62 = vld [vmem:[#allocation7 + $0x60] sm:$0xff]
    %v63 = vld [vmem:[#allocation7 + $0x68] sm:$0xff]
    %v64 = vld [vmem:[#allocation7 + $0x70] sm:$0xff]
    %v65 = vld [vmem:[#allocation7 + $0x78] sm:$0xff]
    %v66 = vld [vmem:[#allocation7 + $0x80] sm:$0xff]
    %v67 = vld [vmem:[#allocation7 + $0x88] sm:$0xff]
    %v68 = vld [vmem:[#allocation7 + $0x90] sm:$0xff]
    %v69 = vld [vmem:[#allocation7 + $0x98] sm:$0xff]
    %v70 = vld [vmem:[#allocation7 + $0xa0] sm:$0xff]
    %v71 = vld [vmem:[#allocation7 + $0xa8] sm:$0xff]
    %v72 = vld [vmem:[#allocation7 + $0xb0] sm:$0xff]
    %v73 = vld [vmem:[#allocation7 + $0xb8] sm:$0xff]
    %v74 = vld [vmem:[#allocation7 + $0xc0] sm:$0xff]
    %v75 = vld [vmem:[#allocation7 + $0xc8] sm:$0xff]
    %v76 = vld [vmem:[#allocation7 + $0xd0] sm:$0xff]
    %v77 = vld [vmem:[#allocation7 + $0xd8] sm:$0xff]
    %v78 = vld [vmem:[#allocation7 + $0xe0] sm:$0xff]
    %v79 = vld [vmem:[#allocation7 + $0xe8] sm:$0xff]
    %v80 = vld [vmem:[#allocation7 + $0xf0] sm:$0xff]
    %v81 = vld [vmem:[#allocation7 + $0xf8] sm:$0xff]
    %v82 = vld [vmem:[#allocation2] sm:$0xff]
    %v83 = vld [vmem:[#allocation3] sm:$0xff]
    %v84 = vld [vmem:[#allocation4] sm:$0xff]
    %v85 = vld [vmem:[#allocation4 + $0x8] sm:$0xff]
    %v86 = vld [vmem:[#allocation4 + $0x10] sm:$0xff]
    %v87 = vld [vmem:[#allocation4 + $0x18] sm:$0xff]
    %v88 = vpack.c.bf16 %v82, %v82
    %v121 = vunpack.c.l.b16 %v50
    %v122 = vunpack.c.h.b16 %v50
    %v123 = vunpack.c.l.b16 %v51
    %v124 = vunpack.c.h.b16 %v51
    %v125 = vunpack.c.l.b16 %v52
    %v126 = vunpack.c.h.b16 %v52
    %v127 = vunpack.c.l.b16 %v53
    %v128 = vunpack.c.h.b16 %v53
    %v129 = vunpack.c.l.b16 %v54
    %v130 = vunpack.c.h.b16 %v54
    %v131 = vunpack.c.l.b16 %v55
    %v132 = vunpack.c.h.b16 %v55
    %v133 = vunpack.c.l.b16 %v56
    %v134 = vunpack.c.h.b16 %v56
    %v135 = vunpack.c.l.b16 %v57
    %v136 = vunpack.c.h.b16 %v57
    %v137 = vunpack.c.l.b16 %v58
    %v138 = vunpack.c.h.b16 %v58
    %v139 = vunpack.c.l.b16 %v59
    %v140 = vunpack.c.h.b16 %v59
    %v141 = vunpack.c.l.b16 %v60
    %v142 = vunpack.c.h.b16 %v60
    %v143 = vunpack.c.l.b16 %v61
    %v144 = vunpack.c.h.b16 %v61
    %v145 = vunpack.c.l.b16 %v62
    %v146 = vunpack.c.h.b16 %v62
    %v147 = vunpack.c.l.b16 %v63
    %v148 = vunpack.c.h.b16 %v63
    %v149 = vunpack.c.l.b16 %v64
    %v150 = vunpack.c.h.b16 %v64
    %v151 = vunpack.c.l.b16 %v65
    %v152 = vunpack.c.h.b16 %v65
    %v153 = vunpack.c.l.b16 %v66
    %v154 = vunpack.c.h.b16 %v66
    %v155 = vunpack.c.l.b16 %v67
    %v156 = vunpack.c.h.b16 %v67
    %v157 = vunpack.c.l.b16 %v68
    %v158 = vunpack.c.h.b16 %v68
    %v159 = vunpack.c.l.b16 %v69
    %v160 = vunpack.c.h.b16 %v69
    %v161 = vunpack.c.l.b16 %v70
    %v162 = vunpack.c.h.b16 %v70
    %v163 = vunpack.c.l.b16 %v71
    %v164 = vunpack.c.h.b16 %v71
    %v165 = vunpack.c.l.b16 %v72
    %v166 = vunpack.c.h.b16 %v72
    %v167 = vunpack.c.l.b16 %v73
    %v168 = vunpack.c.h.b16 %v73
    %v169 = vunpack.c.l.b16 %v74
    %v170 = vunpack.c.h.b16 %v74
    %v171 = vunpack.c.l.b16 %v75
    %v172 = vunpack.c.h.b16 %v75
    %v173 = vunpack.c.l.b16 %v76
    %v174 = vunpack.c.h.b16 %v76
    %v175 = vunpack.c.l.b16 %v77
    %v176 = vunpack.c.h.b16 %v77
    %v177 = vunpack.c.l.b16 %v78
    %v178 = vunpack.c.h.b16 %v78
    %v179 = vunpack.c.l.b16 %v79
    %v180 = vunpack.c.h.b16 %v79
    %v181 = vunpack.c.l.b16 %v80
    %v182 = vunpack.c.h.b16 %v80
    %v183 = vunpack.c.l.b16 %v81
    %v184 = vunpack.c.h.b16 %v81
    %v185 = vpack.c.b16 %v125, %v121
    %v186 = vpack.c.b16 %v126, %v122
    %v187 = vpack.c.b16 %v127, %v123
    %v188 = vpack.c.b16 %v128, %v124
    %v189 = vpack.c.b16 %v133, %v129
    %v190 = vpack.c.b16 %v134, %v130
    %v191 = vpack.c.b16 %v135, %v131
    %v192 = vpack.c.b16 %v136, %v132
    %v193 = vpack.c.b16 %v141, %v137
    %v194 = vpack.c.b16 %v142, %v138
    %v195 = vpack.c.b16 %v143, %v139
    %v196 = vpack.c.b16 %v144, %v140
    %v197 = vpack.c.b16 %v149, %v145
    %v198 = vpack.c.b16 %v150, %v146
    %v199 = vpack.c.b16 %v151, %v147
    %v200 = vpack.c.b16 %v152, %v148
    %v201 = vpack.c.b16 %v157, %v153
    %v202 = vpack.c.b16 %v158, %v154
    %v203 = vpack.c.b16 %v159, %v155
    %v204 = vpack.c.b16 %v160, %v156
    %v205 = vpack.c.b16 %v165, %v161
    %v206 = vpack.c.b16 %v166, %v162
    %v207 = vpack.c.b16 %v167, %v163
    %v208 = vpack.c.b16 %v168, %v164
    %v209 = vpack.c.b16 %v173, %v169
    %v210 = vpack.c.b16 %v174, %v170
    %v211 = vpack.c.b16 %v175, %v171
    %v212 = vpack.c.b16 %v176, %v172
    %v213 = vpack.c.b16 %v181, %v177
    %v214 = vpack.c.b16 %v182, %v178
    %v215 = vpack.c.b16 %v183, %v179
    %v216 = vpack.c.b16 %v184, %v180
    %249 = vmatpush.bf16.msra.mxu0 %v213
    %250 = vmatpush.bf16.msra.mxu0 %v209
    %251 = vmatpush.bf16.msra.mxu0 %v205
    %252 = vmatpush.bf16.msra.mxu0 %v201
    %253 = vmatpush.bf16.msra.mxu0 %v197
    %254 = vmatpush.bf16.msra.mxu0 %v193
    %255 = vmatpush.bf16.msra.mxu0 %v189
    %256 = vmatpush.bf16.msra.mxu0 %v185
    %257 = vmatmul.bf16.gmra.mxu0 %v88
    %v258 = vpop.f32.mrf.mxu0
    %v259 = vadd.f32 0.0, %v258
    %v260 = vpop.f32.mrf.mxu0
    %261 = vdwg.mxu0
    %262 = vmatpush.bf16.msra.mxu0 %v214
    %263 = vmatpush.bf16.msra.mxu0 %v210
    %264 = vmatpush.bf16.msra.mxu0 %v206
    %265 = vmatpush.bf16.msra.mxu0 %v202
    %266 = vmatpush.bf16.msra.mxu0 %v198
    %267 = vmatpush.bf16.msra.mxu0 %v194
    %268 = vmatpush.bf16.msra.mxu0 %v190
    %269 = vmatpush.bf16.msra.mxu0 %v186
    %270 = vmatmul.bf16.gmra.mxu0 %v88
    %v271 = vpop.f32.mrf.mxu0
    %v272 = vadd.f32 0.0, %v271
    %v273 = vpop.f32.mrf.mxu0
    %274 = vdwg.mxu0
    %275 = vmatpush.bf16.msra.mxu0 %v215
    %276 = vmatpush.bf16.msra.mxu0 %v211
    %277 = vmatpush.bf16.msra.mxu0 %v207
    %278 = vmatpush.bf16.msra.mxu0 %v203
    %279 = vmatpush.bf16.msra.mxu0 %v199
    %280 = vmatpush.bf16.msra.mxu0 %v195
    %281 = vmatpush.bf16.msra.mxu0 %v191
    %282 = vmatpush.bf16.msra.mxu0 %v187
    %283 = vmatmul.bf16.gmra.mxu0 %v88
    %v284 = vpop.f32.mrf.mxu0
    %v285 = vadd.f32 0.0, %v284
    %v286 = vpop.f32.mrf.mxu0
    %287 = vdwg.mxu0
    %288 = vmatpush.bf16.msra.mxu0 %v216
    %289 = vmatpush.bf16.msra.mxu0 %v212
    %290 = vmatpush.bf16.msra.mxu0 %v208
    %291 = vmatpush.bf16.msra.mxu0 %v204
    %292 = vmatpush.bf16.msra.mxu0 %v200
    %293 = vmatpush.bf16.msra.mxu0 %v196
    %294 = vmatpush.bf16.msra.mxu0 %v192
    %295 = vmatpush.bf16.msra.mxu0 %v188
    %296 = vmatmul.bf16.gmra.mxu0 %v88
    %v297 = vpop.f32.mrf.mxu0
    %v298 = vadd.f32 0.0, %v297
    %v299 = vpop.f32.mrf.mxu0
    %300 = vdwg.mxu0
    %v301 = vadd.f32 %v84, %v259
    %v302 = vadd.f32 %v85, %v272
    %v303 = vadd.f32 %v86, %v285
    %v304 = vadd.f32 %v87, %v298
    %v305 = vxor.u32 %v301, 2147483648
    %v306 = vmul.f32 %v305, 1.442695
    %v307 = vpow.pop %v306
    %v308 = vadd.f32 %v307, 1.0
    %v309 = vrcp.pop %v308
    %v310 = vmul.f32 %v308, %v309
    %v311 = vsub.f32 1.0, %v310
    %v312 = vmul.f32 %v309, %v311
    %v313 = vadd.f32 %v309, %v312
    %vm314 = vweird.f32 %v308
    %vm315 = vweird.f32 %v309
    %vm316 = vmor %vm314, %vm315
    %v317 = vsel %vm316, %v309, %v313
    %v318 = vand.u32 2147483647, %v308
    %vm319 = vcmp.eq.f32.partialorder %v318, 8.507059e+37
    %v320 = vand.u32 %v308, 2147483648
    %v321 = vor.u32 1.1754944e-38, %v320
    %v322 = vsel %vm319, %v321, %v317
    %v323 = vmul.f32 1.0, %v322
    %v324 = vxor.u32 %v302, 2147483648
    %v325 = vmul.f32 %v324, 1.442695
    %v326 = vpow.pop %v325
    %v327 = vadd.f32 %v326, 1.0
    %v328 = vrcp.pop %v327
    %v329 = vmul.f32 %v327, %v328
    %v330 = vsub.f32 1.0, %v329
    %v331 = vmul.f32 %v328, %v330
    %v332 = vadd.f32 %v328, %v331
    %vm333 = vweird.f32 %v327
    %vm334 = vweird.f32 %v328
    %vm335 = vmor %vm333, %vm334
    %v336 = vsel %vm335, %v328, %v332
    %v337 = vand.u32 2147483647, %v327
    %vm338 = vcmp.eq.f32.partialorder %v337, 8.507059e+37
    %v339 = vand.u32 %v327, 2147483648
    %v340 = vor.u32 1.1754944e-38, %v339
    %v341 = vsel %vm338, %v340, %v336
    %v342 = vmul.f32 1.0, %v341
    %v343 = vtanh.pop %v303
    %v344 = vxor.u32 %v304, 2147483648
    %v345 = vmul.f32 %v344, 1.442695
    %v346 = vpow.pop %v345
    %v347 = vadd.f32 %v346, 1.0
    %v348 = vrcp.pop %v347
    %v349 = vmul.f32 %v347, %v348
    %v350 = vsub.f32 1.0, %v349
    %v351 = vmul.f32 %v348, %v350
    %v352 = vadd.f32 %v348, %v351
    %vm353 = vweird.f32 %v347
    %vm354 = vweird.f32 %v348
    %vm355 = vmor %vm353, %vm354
    %v356 = vsel %vm355, %v348, %v352
    %v357 = vand.u32 2147483647, %v347
    %vm358 = vcmp.eq.f32.partialorder %v357, 8.507059e+37
    %v359 = vand.u32 %v347, 2147483648
    %v360 = vor.u32 1.1754944e-38, %v359
    %v361 = vsel %vm358, %v360, %v356
    %v362 = vmul.f32 1.0, %v361
    %v363 = vmul.f32 %v342, %v83
    %v364 = vmul.f32 %v323, %v343
    %v365 = vadd.f32 %v363, %v364
    %v366 = vtanh.pop %v365
    %v367 = vmul.f32 %v362, %v366
    %368 = vst [vmem:[#allocation3] sm:$0xff] %v365
    %369 = vst [vmem:[#allocation2] sm:$0xff] %v367
    %v370 = vpack.c.bf16 %v367, %v367
    %371 = vst [vmem:[#allocation9] sm:$0xf] %v370
    %v372 = vld [vmem:[#allocation2] sm:$0xff]
    %v373 = vld [vmem:[#allocation3] sm:$0xff]
    %s374 = scalar_lea.vmem [#allocation4], 32
    %v375 = vld [vmem:[%s374] sm:$0xff]
    %v376 = vld [vmem:[%s374 + $0x8] sm:$0xff]
    %v377 = vld [vmem:[%s374 + $0x10] sm:$0xff]
    %v378 = vld [vmem:[%s374 + $0x18] sm:$0xff]
    %v379 = vpack.c.bf16 %v372, %v372
    %380 = vmatpush.bf16.msra.mxu0 %v213
    %381 = vmatpush.bf16.msra.mxu0 %v209
    %382 = vmatpush.bf16.msra.mxu0 %v205
    %383 = vmatpush.bf16.msra.mxu0 %v201
    %384 = vmatpush.bf16.msra.mxu0 %v197
    %385 = vmatpush.bf16.msra.mxu0 %v193
    %386 = vmatpush.bf16.msra.mxu0 %v189
    %387 = vmatpush.bf16.msra.mxu0 %v185
    %388 = vmatmul.bf16.gmra.mxu0 %v379
    %v389 = vpop.f32.mrf.mxu0
    %v390 = vadd.f32 0.0, %v389
    %v391 = vpop.f32.mrf.mxu0
    %392 = vdwg.mxu0
    %393 = vmatpush.bf16.msra.mxu0 %v214
    %394 = vmatpush.bf16.msra.mxu0 %v210
    %395 = vmatpush.bf16.msra.mxu0 %v206
    %396 = vmatpush.bf16.msra.mxu0 %v202
    %397 = vmatpush.bf16.msra.mxu0 %v198
    %398 = vmatpush.bf16.msra.mxu0 %v194
    %399 = vmatpush.bf16.msra.mxu0 %v190
    %400 = vmatpush.bf16.msra.mxu0 %v186
    %401 = vmatmul.bf16.gmra.mxu0 %v379
    %v402 = vpop.f32.mrf.mxu0
    %v403 = vadd.f32 0.0, %v402
    %v404 = vpop.f32.mrf.mxu0
    %405 = vdwg.mxu0
    %406 = vmatpush.bf16.msra.mxu0 %v215
    %407 = vmatpush.bf16.msra.mxu0 %v211
    %408 = vmatpush.bf16.msra.mxu0 %v207
    %409 = vmatpush.bf16.msra.mxu0 %v203
    %410 = vmatpush.bf16.msra.mxu0 %v199
    %411 = vmatpush.bf16.msra.mxu0 %v195
    %412 = vmatpush.bf16.msra.mxu0 %v191
    %413 = vmatpush.bf16.msra.mxu0 %v187
    %414 = vmatmul.bf16.gmra.mxu0 %v379
    %v415 = vpop.f32.mrf.mxu0
    %v416 = vadd.f32 0.0, %v415
    %v417 = vpop.f32.mrf.mxu0
    %418 = vdwg.mxu0
    %419 = vmatpush.bf16.msra.mxu0 %v216
    %420 = vmatpush.bf16.msra.mxu0 %v212
    %421 = vmatpush.bf16.msra.mxu0 %v208
    %422 = vmatpush.bf16.msra.mxu0 %v204
    %423 = vmatpush.bf16.msra.mxu0 %v200
    %424 = vmatpush.bf16.msra.mxu0 %v196
    %425 = vmatpush.bf16.msra.mxu0 %v192
    %426 = vmatpush.bf16.msra.mxu0 %v188
    %427 = vmatmul.bf16.gmra.mxu0 %v379
    %v428 = vpop.f32.mrf.mxu0
    %v429 = vadd.f32 0.0, %v428
    %v430 = vpop.f32.mrf.mxu0
    %431 = vdwg.mxu0
    %v432 = vadd.f32 %v375, %v390
    %v433 = vadd.f32 %v376, %v403
    %v434 = vadd.f32 %v377, %v416
    %v435 = vadd.f32 %v378, %v429
    %v436 = vxor.u32 %v432, 2147483648
    %v437 = vmul.f32 %v436, 1.442695
    %v438 = vpow.pop %v437
    %v439 = vadd.f32 %v438, 1.0
    %v440 = vrcp.pop %v439
    %v441 = vmul.f32 %v439, %v440
    %v442 = vsub.f32 1.0, %v441
    %v443 = vmul.f32 %v440, %v442
    %v444 = vadd.f32 %v440, %v443
    %vm445 = vweird.f32 %v439
    %vm446 = vweird.f32 %v440
    %vm447 = vmor %vm445, %vm446
    %v448 = vsel %vm447, %v440, %v444
    %v449 = vand.u32 2147483647, %v439
    %vm450 = vcmp.eq.f32.partialorder %v449, 8.507059e+37
    %v451 = vand.u32 %v439, 2147483648
    %v452 = vor.u32 1.1754944e-38, %v451
    %v453 = vsel %vm450, %v452, %v448
    %v454 = vmul.f32 1.0, %v453
    %v455 = vxor.u32 %v433, 2147483648
    %v456 = vmul.f32 %v455, 1.442695
    %v457 = vpow.pop %v456
    %v458 = vadd.f32 %v457, 1.0
    %v459 = vrcp.pop %v458
    %v460 = vmul.f32 %v458, %v459
    %v461 = vsub.f32 1.0, %v460
    %v462 = vmul.f32 %v459, %v461
    %v463 = vadd.f32 %v459, %v462
    %vm464 = vweird.f32 %v458
    %vm465 = vweird.f32 %v459
    %vm466 = vmor %vm464, %vm465
    %v467 = vsel %vm466, %v459, %v463
    %v468 = vand.u32 2147483647, %v458
    %vm469 = vcmp.eq.f32.partialorder %v468, 8.507059e+37
    %v470 = vand.u32 %v458, 2147483648
    %v471 = vor.u32 1.1754944e-38, %v470
    %v472 = vsel %vm469, %v471, %v467
    %v473 = vmul.f32 1.0, %v472
    %v474 = vtanh.pop %v434
    %v475 = vxor.u32 %v435, 2147483648
    %v476 = vmul.f32 %v475, 1.442695
    %v477 = vpow.pop %v476
    %v478 = vadd.f32 %v477, 1.0
    %v479 = vrcp.pop %v478
    %v480 = vmul.f32 %v478, %v479
    %v481 = vsub.f32 1.0, %v480
    %v482 = vmul.f32 %v479, %v481
    %v483 = vadd.f32 %v479, %v482
    %vm484 = vweird.f32 %v478
    %vm485 = vweird.f32 %v479
    %vm486 = vmor %vm484, %vm485
    %v487 = vsel %vm486, %v479, %v483
    %v488 = vand.u32 2147483647, %v478
    %vm489 = vcmp.eq.f32.partialorder %v488, 8.507059e+37
    %v490 = vand.u32 %v478, 2147483648
    %v491 = vor.u32 1.1754944e-38, %v490
    %v492 = vsel %vm489, %v491, %v487
    %v493 = vmul.f32 1.0, %v492
    %v494 = vmul.f32 %v473, %v373
    %v495 = vmul.f32 %v454, %v474
    %v496 = vadd.f32 %v494, %v495
    %v497 = vtanh.pop %v496
    %v498 = vmul.f32 %v493, %v497
    %499 = vst [vmem:[#allocation3] sm:$0xff] %v496
    %500 = vst [vmem:[#allocation2] sm:$0xff] %v498
    %v501 = vpack.c.bf16 %v498, %v498
    %s502 = scalar_lea.vmem [#allocation9], 4
    %503 = vst [vmem:[%s502] sm:$0xf] %v501
    %v504 = vld [vmem:[#allocation2] sm:$0xff]
    %v505 = vld [vmem:[#allocation3] sm:$0xff]
    %s506 = scalar_lea.vmem [#allocation4], 64
    %v507 = vld [vmem:[%s506] sm:$0xff]
    %v508 = vld [vmem:[%s506 + $0x8] sm:$0xff]
    %v509 = vld [vmem:[%s506 + $0x10] sm:$0xff]
    %v510 = vld [vmem:[%s506 + $0x18] sm:$0xff]
    %v511 = vpack.c.bf16 %v504, %v504
    %512 = vmatpush.bf16.msra.mxu0 %v213
    %513 = vmatpush.bf16.msra.mxu0 %v209
    %514 = vmatpush.bf16.msra.mxu0 %v205
    %515 = vmatpush.bf16.msra.mxu0 %v201
    %516 = vmatpush.bf16.msra.mxu0 %v197
    %517 = vmatpush.bf16.msra.mxu0 %v193
    %518 = vmatpush.bf16.msra.mxu0 %v189
    %519 = vmatpush.bf16.msra.mxu0 %v185
    %520 = vmatmul.bf16.gmra.mxu0 %v511
    %v521 = vpop.f32.mrf.mxu0
    %v522 = vadd.f32 0.0, %v521
    %v523 = vpop.f32.mrf.mxu0
    %524 = vdwg.mxu0
    %525 = vmatpush.bf16.msra.mxu0 %v214
    %526 = vmatpush.bf16.msra.mxu0 %v210
    %527 = vmatpush.bf16.msra.mxu0 %v206
    %528 = vmatpush.bf16.msra.mxu0 %v202
    %529 = vmatpush.bf16.msra.mxu0 %v198
    %530 = vmatpush.bf16.msra.mxu0 %v194
    %531 = vmatpush.bf16.msra.mxu0 %v190
    %532 = vmatpush.bf16.msra.mxu0 %v186
    %533 = vmatmul.bf16.gmra.mxu0 %v511
    %v534 = vpop.f32.mrf.mxu0
    %v535 = vadd.f32 0.0, %v534
    %v536 = vpop.f32.mrf.mxu0
    %537 = vdwg.mxu0
    %538 = vmatpush.bf16.msra.mxu0 %v215
    %539 = vmatpush.bf16.msra.mxu0 %v211
    %540 = vmatpush.bf16.msra.mxu0 %v207
    %541 = vmatpush.bf16.msra.mxu0 %v203
    %542 = vmatpush.bf16.msra.mxu0 %v199
    %543 = vmatpush.bf16.msra.mxu0 %v195
    %544 = vmatpush.bf16.msra.mxu0 %v191
    %545 = vmatpush.bf16.msra.mxu0 %v187
    %546 = vmatmul.bf16.gmra.mxu0 %v511
    %v547 = vpop.f32.mrf.mxu0
    %v548 = vadd.f32 0.0, %v547
    %v549 = vpop.f32.mrf.mxu0
    %550 = vdwg.mxu0
    %551 = vmatpush.bf16.msra.mxu0 %v216
    %552 = vmatpush.bf16.msra.mxu0 %v212
    %553 = vmatpush.bf16.msra.mxu0 %v208
    %554 = vmatpush.bf16.msra.mxu0 %v204
    %555 = vmatpush.bf16.msra.mxu0 %v200
    %556 = vmatpush.bf16.msra.mxu0 %v196
    %557 = vmatpush.bf16.msra.mxu0 %v192
    %558 = vmatpush.bf16.msra.mxu0 %v188
    %559 = vmatmul.bf16.gmra.mxu0 %v511
    %v560 = vpop.f32.mrf.mxu0
    %v561 = vadd.f32 0.0, %v560
    %v562 = vpop.f32.mrf.mxu0
    %563 = vdwg.mxu0
    %v564 = vadd.f32 %v507, %v522
    %v565 = vadd.f32 %v508, %v535
    %v566 = vadd.f32 %v509, %v548
    %v567 = vadd.f32 %v510, %v561
    %v568 = vxor.u32 %v564, 2147483648
    %v569 = vmul.f32 %v568, 1.442695
    %v570 = vpow.pop %v569
    %v571 = vadd.f32 %v570, 1.0
    %v572 = vrcp.pop %v571
    %v573 = vmul.f32 %v571, %v572
    %v574 = vsub.f32 1.0, %v573
    %v575 = vmul.f32 %v572, %v574
    %v576 = vadd.f32 %v572, %v575
    %vm577 = vweird.f32 %v571
    %vm578 = vweird.f32 %v572
    %vm579 = vmor %vm577, %vm578
    %v580 = vsel %vm579, %v572, %v576
    %v581 = vand.u32 2147483647, %v571
    %vm582 = vcmp.eq.f32.partialorder %v581, 8.507059e+37
    %v583 = vand.u32 %v571, 2147483648
    %v584 = vor.u32 1.1754944e-38, %v583
    %v585 = vsel %vm582, %v584, %v580
    %v586 = vmul.f32 1.0, %v585
    %v587 = vxor.u32 %v565, 2147483648
    %v588 = vmul.f32 %v587, 1.442695
    %v589 = vpow.pop %v588
    %v590 = vadd.f32 %v589, 1.0
    %v591 = vrcp.pop %v590
    %v592 = vmul.f32 %v590, %v591
    %v593 = vsub.f32 1.0, %v592
    %v594 = vmul.f32 %v591, %v593
    %v595 = vadd.f32 %v591, %v594
    %vm596 = vweird.f32 %v590
    %vm597 = vweird.f32 %v591
    %vm598 = vmor %vm596, %vm597
    %v599 = vsel %vm598, %v591, %v595
    %v600 = vand.u32 2147483647, %v590
    %vm601 = vcmp.eq.f32.partialorder %v600, 8.507059e+37
    %v602 = vand.u32 %v590, 2147483648
    %v603 = vor.u32 1.1754944e-38, %v602
    %v604 = vsel %vm601, %v603, %v599
    %v605 = vmul.f32 1.0, %v604
    %v606 = vtanh.pop %v566
    %v607 = vxor.u32 %v567, 2147483648
    %v608 = vmul.f32 %v607, 1.442695
    %v609 = vpow.pop %v608
    %v610 = vadd.f32 %v609, 1.0
    %v611 = vrcp.pop %v610
    %v612 = vmul.f32 %v610, %v611
    %v613 = vsub.f32 1.0, %v612
    %v614 = vmul.f32 %v611, %v613
    %v615 = vadd.f32 %v611, %v614
    %vm616 = vweird.f32 %v610
    %vm617 = vweird.f32 %v611
    %vm618 = vmor %vm616, %vm617
    %v619 = vsel %vm618, %v611, %v615
    %v620 = vand.u32 2147483647, %v610
    %vm621 = vcmp.eq.f32.partialorder %v620, 8.507059e+37
    %v622 = vand.u32 %v610, 2147483648
    %v623 = vor.u32 1.1754944e-38, %v622
    %v624 = vsel %vm621, %v623, %v619
    %v625 = vmul.f32 1.0, %v624
    %v626 = vmul.f32 %v605, %v505
    %v627 = vmul.f32 %v586, %v606
    %v628 = vadd.f32 %v626, %v627
    %v629 = vtanh.pop %v628
    %v630 = vmul.f32 %v625, %v629
    %631 = vst [vmem:[#allocation3] sm:$0xff] %v628
    %632 = vst [vmem:[#allocation2] sm:$0xff] %v630
    %v633 = vpack.c.bf16 %v630, %v630
    %s634 = scalar_lea.vmem [#allocation9], 8
    %635 = vst [vmem:[%s634] sm:$0xf] %v633
    %v636 = vld [vmem:[#allocation2] sm:$0xff]
    %v637 = vld [vmem:[#allocation3] sm:$0xff]
    %s638 = scalar_lea.vmem [#allocation4], 96
    %v639 = vld [vmem:[%s638] sm:$0xff]
    %v640 = vld [vmem:[%s638 + $0x8] sm:$0xff]
    %v641 = vld [vmem:[%s638 + $0x10] sm:$0xff]
    %v642 = vld [vmem:[%s638 + $0x18] sm:$0xff]
    %v643 = vpack.c.bf16 %v636, %v636
    %644 = vmatpush.bf16.msra.mxu0 %v213
    %645 = vmatpush.bf16.msra.mxu0 %v209
    %646 = vmatpush.bf16.msra.mxu0 %v205
    %647 = vmatpush.bf16.msra.mxu0 %v201
    %648 = vmatpush.bf16.msra.mxu0 %v197
    %649 = vmatpush.bf16.msra.mxu0 %v193
    %650 = vmatpush.bf16.msra.mxu0 %v189
    %651 = vmatpush.bf16.msra.mxu0 %v185
    %652 = vmatmul.bf16.gmra.mxu0 %v643
    %v653 = vpop.f32.mrf.mxu0
    %v654 = vadd.f32 0.0, %v653
    %v655 = vpop.f32.mrf.mxu0
    %656 = vdwg.mxu0
    %657 = vmatpush.bf16.msra.mxu0 %v214
    %658 = vmatpush.bf16.msra.mxu0 %v210
    %659 = vmatpush.bf16.msra.mxu0 %v206
    %660 = vmatpush.bf16.msra.mxu0 %v202
    %661 = vmatpush.bf16.msra.mxu0 %v198
    %662 = vmatpush.bf16.msra.mxu0 %v194
    %663 = vmatpush.bf16.msra.mxu0 %v190
    %664 = vmatpush.bf16.msra.mxu0 %v186
    %665 = vmatmul.bf16.gmra.mxu0 %v643
    %v666 = vpop.f32.mrf.mxu0
    %v667 = vadd.f32 0.0, %v666
    %v668 = vpop.f32.mrf.mxu0
    %669 = vdwg.mxu0
    %670 = vmatpush.bf16.msra.mxu0 %v215
    %671 = vmatpush.bf16.msra.mxu0 %v211
    %672 = vmatpush.bf16.msra.mxu0 %v207
    %673 = vmatpush.bf16.msra.mxu0 %v203
    %674 = vmatpush.bf16.msra.mxu0 %v199
    %675 = vmatpush.bf16.msra.mxu0 %v195
    %676 = vmatpush.bf16.msra.mxu0 %v191
    %677 = vmatpush.bf16.msra.mxu0 %v187
    %678 = vmatmul.bf16.gmra.mxu0 %v643
    %v679 = vpop.f32.mrf.mxu0
    %v680 = vadd.f32 0.0, %v679
    %v681 = vpop.f32.mrf.mxu0
    %682 = vdwg.mxu0
    %683 = vmatpush.bf16.msra.mxu0 %v216
    %684 = vmatpush.bf16.msra.mxu0 %v212
    %685 = vmatpush.bf16.msra.mxu0 %v208
    %686 = vmatpush.bf16.msra.mxu0 %v204
    %687 = vmatpush.bf16.msra.mxu0 %v200
    %688 = vmatpush.bf16.msra.mxu0 %v196
    %689 = vmatpush.bf16.msra.mxu0 %v192
    %690 = vmatpush.bf16.msra.mxu0 %v188
    %691 = vmatmul.bf16.gmra.mxu0 %v643
    %v692 = vpop.f32.mrf.mxu0
    %v693 = vadd.f32 0.0, %v692
    %v694 = vpop.f32.mrf.mxu0
    %695 = vdwg.mxu0
    %v696 = vadd.f32 %v639, %v654
    %v697 = vadd.f32 %v640, %v667
    %v698 = vadd.f32 %v641, %v680
    %v699 = vadd.f32 %v642, %v693
    %v700 = vxor.u32 %v696, 2147483648
    %v701 = vmul.f32 %v700, 1.442695
    %v702 = vpow.pop %v701
    %v703 = vadd.f32 %v702, 1.0
    %v704 = vrcp.pop %v703
    %v705 = vmul.f32 %v703, %v704
    %v706 = vsub.f32 1.0, %v705
    %v707 = vmul.f32 %v704, %v706
    %v708 = vadd.f32 %v704, %v707
    %vm709 = vweird.f32 %v703
    %vm710 = vweird.f32 %v704
    %vm711 = vmor %vm709, %vm710
    %v712 = vsel %vm711, %v704, %v708
    %v713 = vand.u32 2147483647, %v703
    %vm714 = vcmp.eq.f32.partialorder %v713, 8.507059e+37
    %v715 = vand.u32 %v703, 2147483648
    %v716 = vor.u32 1.1754944e-38, %v715
    %v717 = vsel %vm714, %v716, %v712
    %v718 = vmul.f32 1.0, %v717
    %v719 = vxor.u32 %v697, 2147483648
    %v720 = vmul.f32 %v719, 1.442695
    %v721 = vpow.pop %v720
    %v722 = vadd.f32 %v721, 1.0
    %v723 = vrcp.pop %v722
    %v724 = vmul.f32 %v722, %v723
    %v725 = vsub.f32 1.0, %v724
    %v726 = vmul.f32 %v723, %v725
    %v727 = vadd.f32 %v723, %v726
    %vm728 = vweird.f32 %v722
    %vm729 = vweird.f32 %v723
    %vm730 = vmor %vm728, %vm729
    %v731 = vsel %vm730, %v723, %v727
    %v732 = vand.u32 2147483647, %v722
    %vm733 = vcmp.eq.f32.partialorder %v732, 8.507059e+37
    %v734 = vand.u32 %v722, 2147483648
    %v735 = vor.u32 1.1754944e-38, %v734
    %v736 = vsel %vm733, %v735, %v731
    %v737 = vmul.f32 1.0, %v736
    %v738 = vtanh.pop %v698
    %v739 = vxor.u32 %v699, 2147483648
    %v740 = vmul.f32 %v739, 1.442695
    %v741 = vpow.pop %v740
    %v742 = vadd.f32 %v741, 1.0
    %v743 = vrcp.pop %v742
    %v744 = vmul.f32 %v742, %v743
    %v745 = vsub.f32 1.0, %v744
    %v746 = vmul.f32 %v743, %v745
    %v747 = vadd.f32 %v743, %v746
    %vm748 = vweird.f32 %v742
    %vm749 = vweird.f32 %v743
    %vm750 = vmor %vm748, %vm749
    %v751 = vsel %vm750, %v743, %v747
    %v752 = vand.u32 2147483647, %v742
    %vm753 = vcmp.eq.f32.partialorder %v752, 8.507059e+37
    %v754 = vand.u32 %v742, 2147483648
    %v755 = vor.u32 1.1754944e-38, %v754
    %v756 = vsel %vm753, %v755, %v751
    %v757 = vmul.f32 1.0, %v756
    %v758 = vmul.f32 %v737, %v637
    %v759 = vmul.f32 %v718, %v738
    %v760 = vadd.f32 %v758, %v759
    %v761 = vtanh.pop %v760
    %v762 = vmul.f32 %v757, %v761
    %763 = vst [vmem:[#allocation3] sm:$0xff] %v760
    %764 = vst [vmem:[#allocation2] sm:$0xff] %v762
    %v765 = vpack.c.bf16 %v762, %v762
    %s766 = scalar_lea.vmem [#allocation9], 12
    %767 = vst [vmem:[%s766] sm:$0xf] %v765
    %v768 = vld [vmem:[#allocation2] sm:$0xff]
    %v769 = vld [vmem:[#allocation3] sm:$0xff]
    %s770 = scalar_lea.vmem [#allocation4], 128
    %v771 = vld [vmem:[%s770] sm:$0xff]
    %v772 = vld [vmem:[%s770 + $0x8] sm:$0xff]
    %v773 = vld [vmem:[%s770 + $0x10] sm:$0xff]
    %v774 = vld [vmem:[%s770 + $0x18] sm:$0xff]
    %v775 = vpack.c.bf16 %v768, %v768
    %776 = vmatpush.bf16.msra.mxu0 %v213
    %777 = vmatpush.bf16.msra.mxu0 %v209
    %778 = vmatpush.bf16.msra.mxu0 %v205
    %779 = vmatpush.bf16.msra.mxu0 %v201
    %780 = vmatpush.bf16.msra.mxu0 %v197
    %781 = vmatpush.bf16.msra.mxu0 %v193
    %782 = vmatpush.bf16.msra.mxu0 %v189
    %783 = vmatpush.bf16.msra.mxu0 %v185
    %784 = vmatmul.bf16.gmra.mxu0 %v775
    %v785 = vpop.f32.mrf.mxu0
    %v786 = vadd.f32 0.0, %v785
    %v787 = vpop.f32.mrf.mxu0
    %788 = vdwg.mxu0
    %789 = vmatpush.bf16.msra.mxu0 %v214
    %790 = vmatpush.bf16.msra.mxu0 %v210
    %791 = vmatpush.bf16.msra.mxu0 %v206
    %792 = vmatpush.bf16.msra.mxu0 %v202
    %793 = vmatpush.bf16.msra.mxu0 %v198
    %794 = vmatpush.bf16.msra.mxu0 %v194
    %795 = vmatpush.bf16.msra.mxu0 %v190
    %796 = vmatpush.bf16.msra.mxu0 %v186
    %797 = vmatmul.bf16.gmra.mxu0 %v775
    %v798 = vpop.f32.mrf.mxu0
    %v799 = vadd.f32 0.0, %v798
    %v800 = vpop.f32.mrf.mxu0
    %801 = vdwg.mxu0
    %802 = vmatpush.bf16.msra.mxu0 %v215
    %803 = vmatpush.bf16.msra.mxu0 %v211
    %804 = vmatpush.bf16.msra.mxu0 %v207
    %805 = vmatpush.bf16.msra.mxu0 %v203
    %806 = vmatpush.bf16.msra.mxu0 %v199
    %807 = vmatpush.bf16.msra.mxu0 %v195
    %808 = vmatpush.bf16.msra.mxu0 %v191
    %809 = vmatpush.bf16.msra.mxu0 %v187
    %810 = vmatmul.bf16.gmra.mxu0 %v775
    %v811 = vpop.f32.mrf.mxu0
    %v812 = vadd.f32 0.0, %v811
    %v813 = vpop.f32.mrf.mxu0
    %814 = vdwg.mxu0
    %815 = vmatpush.bf16.msra.mxu0 %v216
    %816 = vmatpush.bf16.msra.mxu0 %v212
    %817 = vmatpush.bf16.msra.mxu0 %v208
    %818 = vmatpush.bf16.msra.mxu0 %v204
    %819 = vmatpush.bf16.msra.mxu0 %v200
    %820 = vmatpush.bf16.msra.mxu0 %v196
    %821 = vmatpush.bf16.msra.mxu0 %v192
    %822 = vmatpush.bf16.msra.mxu0 %v188
    %823 = vmatmul.bf16.gmra.mxu0 %v775
    %v824 = vpop.f32.mrf.mxu0
    %v825 = vadd.f32 0.0, %v824
    %v826 = vpop.f32.mrf.mxu0
    %827 = vdwg.mxu0
    %v828 = vadd.f32 %v771, %v786
    %v829 = vadd.f32 %v772, %v799
    %v830 = vadd.f32 %v773, %v812
    %v831 = vadd.f32 %v774, %v825
    %v832 = vxor.u32 %v828, 2147483648
    %v833 = vmul.f32 %v832, 1.442695
    %v834 = vpow.pop %v833
    %v835 = vadd.f32 %v834, 1.0
    %v836 = vrcp.pop %v835
    %v837 = vmul.f32 %v835, %v836
    %v838 = vsub.f32 1.0, %v837
    %v839 = vmul.f32 %v836, %v838
    %v840 = vadd.f32 %v836, %v839
    %vm841 = vweird.f32 %v835
    %vm842 = vweird.f32 %v836
    %vm843 = vmor %vm841, %vm842
    %v844 = vsel %vm843, %v836, %v840
    %v845 = vand.u32 2147483647, %v835
    %vm846 = vcmp.eq.f32.partialorder %v845, 8.507059e+37
    %v847 = vand.u32 %v835, 2147483648
    %v848 = vor.u32 1.1754944e-38, %v847
    %v849 = vsel %vm846, %v848, %v844
    %v850 = vmul.f32 1.0, %v849
    %v851 = vxor.u32 %v829, 2147483648
    %v852 = vmul.f32 %v851, 1.442695
    %v853 = vpow.pop %v852
    %v854 = vadd.f32 %v853, 1.0
    %v855 = vrcp.pop %v854
    %v856 = vmul.f32 %v854, %v855
    %v857 = vsub.f32 1.0, %v856
    %v858 = vmul.f32 %v855, %v857
    %v859 = vadd.f32 %v855, %v858
    %vm860 = vweird.f32 %v854
    %vm861 = vweird.f32 %v855
    %vm862 = vmor %vm860, %vm861
    %v863 = vsel %vm862, %v855, %v859
    %v864 = vand.u32 2147483647, %v854
    %vm865 = vcmp.eq.f32.partialorder %v864, 8.507059e+37
    %v866 = vand.u32 %v854, 2147483648
    %v867 = vor.u32 1.1754944e-38, %v866
    %v868 = vsel %vm865, %v867, %v863
    %v869 = vmul.f32 1.0, %v868
    %v870 = vtanh.pop %v830
    %v871 = vxor.u32 %v831, 2147483648
    %v872 = vmul.f32 %v871, 1.442695
    %v873 = vpow.pop %v872
    %v874 = vadd.f32 %v873, 1.0
    %v875 = vrcp.pop %v874
    %v876 = vmul.f32 %v874, %v875
    %v877 = vsub.f32 1.0, %v876
    %v878 = vmul.f32 %v875, %v877
    %v879 = vadd.f32 %v875, %v878
    %vm880 = vweird.f32 %v874
    %vm881 = vweird.f32 %v875
    %vm882 = vmor %vm880, %vm881
    %v883 = vsel %vm882, %v875, %v879
    %v884 = vand.u32 2147483647, %v874
    %vm885 = vcmp.eq.f32.partialorder %v884, 8.507059e+37
    %v886 = vand.u32 %v874, 2147483648
    %v887 = vor.u32 1.1754944e-38, %v886
    %v888 = vsel %vm885, %v887, %v883
    %v889 = vmul.f32 1.0, %v888
    %v890 = vmul.f32 %v869, %v769
    %v891 = vmul.f32 %v850, %v870
    %v892 = vadd.f32 %v890, %v891
    %v893 = vtanh.pop %v892
    %v894 = vmul.f32 %v889, %v893
    %895 = vst [vmem:[#allocation3] sm:$0xff] %v892
    %896 = vst [vmem:[#allocation2] sm:$0xff] %v894
    %v897 = vpack.c.bf16 %v894, %v894
    %s898 = scalar_lea.vmem [#allocation9], 16
    %899 = vst [vmem:[%s898] sm:$0xf] %v897
    %v900 = vld [vmem:[#allocation2] sm:$0xff]
    %v901 = vld [vmem:[#allocation3] sm:$0xff]
    %s902 = scalar_lea.vmem [#allocation4], 160
    %v903 = vld [vmem:[%s902] sm:$0xff]
    %v904 = vld [vmem:[%s902 + $0x8] sm:$0xff]
    %v905 = vld [vmem:[%s902 + $0x10] sm:$0xff]
    %v906 = vld [vmem:[%s902 + $0x18] sm:$0xff]
    %v907 = vpack.c.bf16 %v900, %v900
    %908 = vmatpush.bf16.msra.mxu0 %v213
    %909 = vmatpush.bf16.msra.mxu0 %v209
    %910 = vmatpush.bf16.msra.mxu0 %v205
    %911 = vmatpush.bf16.msra.mxu0 %v201
    %912 = vmatpush.bf16.msra.mxu0 %v197
    %913 = vmatpush.bf16.msra.mxu0 %v193
    %914 = vmatpush.bf16.msra.mxu0 %v189
    %915 = vmatpush.bf16.msra.mxu0 %v185
    %916 = vmatmul.bf16.gmra.mxu0 %v907
    %v917 = vpop.f32.mrf.mxu0
    %v918 = vadd.f32 0.0, %v917
    %v919 = vpop.f32.mrf.mxu0
    %920 = vdwg.mxu0
    %921 = vmatpush.bf16.msra.mxu0 %v214
    %922 = vmatpush.bf16.msra.mxu0 %v210
    %923 = vmatpush.bf16.msra.mxu0 %v206
    %924 = vmatpush.bf16.msra.mxu0 %v202
    %925 = vmatpush.bf16.msra.mxu0 %v198
    %926 = vmatpush.bf16.msra.mxu0 %v194
    %927 = vmatpush.bf16.msra.mxu0 %v190
    %928 = vmatpush.bf16.msra.mxu0 %v186
    %929 = vmatmul.bf16.gmra.mxu0 %v907
    %v930 = vpop.f32.mrf.mxu0
    %v931 = vadd.f32 0.0, %v930
    %v932 = vpop.f32.mrf.mxu0
    %933 = vdwg.mxu0
    %934 = vmatpush.bf16.msra.mxu0 %v215
    %935 = vmatpush.bf16.msra.mxu0 %v211
    %936 = vmatpush.bf16.msra.mxu0 %v207
    %937 = vmatpush.bf16.msra.mxu0 %v203
    %938 = vmatpush.bf16.msra.mxu0 %v199
    %939 = vmatpush.bf16.msra.mxu0 %v195
    %940 = vmatpush.bf16.msra.mxu0 %v191
    %941 = vmatpush.bf16.msra.mxu0 %v187
    %942 = vmatmul.bf16.gmra.mxu0 %v907
    %v943 = vpop.f32.mrf.mxu0
    %v944 = vadd.f32 0.0, %v943
    %v945 = vpop.f32.mrf.mxu0
    %946 = vdwg.mxu0
    %947 = vmatpush.bf16.msra.mxu0 %v216
    %948 = vmatpush.bf16.msra.mxu0 %v212
    %949 = vmatpush.bf16.msra.mxu0 %v208
    %950 = vmatpush.bf16.msra.mxu0 %v204
    %951 = vmatpush.bf16.msra.mxu0 %v200
    %952 = vmatpush.bf16.msra.mxu0 %v196
    %953 = vmatpush.bf16.msra.mxu0 %v192
    %954 = vmatpush.bf16.msra.mxu0 %v188
    %955 = vmatmul.bf16.gmra.mxu0 %v907
    %v956 = vpop.f32.mrf.mxu0
    %v957 = vadd.f32 0.0, %v956
    %v958 = vpop.f32.mrf.mxu0
    %959 = vdwg.mxu0
    %v960 = vadd.f32 %v903, %v918
    %v961 = vadd.f32 %v904, %v931
    %v962 = vadd.f32 %v905, %v944
    %v963 = vadd.f32 %v906, %v957
    %v964 = vxor.u32 %v960, 2147483648
    %v965 = vmul.f32 %v964, 1.442695
    %v966 = vpow.pop %v965
    %v967 = vadd.f32 %v966, 1.0
    %v968 = vrcp.pop %v967
    %v969 = vmul.f32 %v967, %v968
    %v970 = vsub.f32 1.0, %v969
    %v971 = vmul.f32 %v968, %v970
    %v972 = vadd.f32 %v968, %v971
    %vm973 = vweird.f32 %v967
    %vm974 = vweird.f32 %v968
    %vm975 = vmor %vm973, %vm974
    %v976 = vsel %vm975, %v968, %v972
    %v977 = vand.u32 2147483647, %v967
    %vm978 = vcmp.eq.f32.partialorder %v977, 8.507059e+37
    %v979 = vand.u32 %v967, 2147483648
    %v980 = vor.u32 1.1754944e-38, %v979
    %v981 = vsel %vm978, %v980, %v976
    %v982 = vmul.f32 1.0, %v981
    %v983 = vxor.u32 %v961, 2147483648
    %v984 = vmul.f32 %v983, 1.442695
    %v985 = vpow.pop %v984
    %v986 = vadd.f32 %v985, 1.0
    %v987 = vrcp.pop %v986
    %v988 = vmul.f32 %v986, %v987
    %v989 = vsub.f32 1.0, %v988
    %v990 = vmul.f32 %v987, %v989
    %v991 = vadd.f32 %v987, %v990
    %vm992 = vweird.f32 %v986
    %vm993 = vweird.f32 %v987
    %vm994 = vmor %vm992, %vm993
    %v995 = vsel %vm994, %v987, %v991
    %v996 = vand.u32 2147483647, %v986
    %vm997 = vcmp.eq.f32.partialorder %v996, 8.507059e+37
    %v998 = vand.u32 %v986, 2147483648
    %v999 = vor.u32 1.1754944e-38, %v998
    %v1000 = vsel %vm997, %v999, %v995
    %v1001 = vmul.f32 1.0, %v1000
    %v1002 = vtanh.pop %v962
    %v1003 = vxor.u32 %v963, 2147483648
    %v1004 = vmul.f32 %v1003, 1.442695
    %v1005 = vpow.pop %v1004
    %v1006 = vadd.f32 %v1005, 1.0
    %v1007 = vrcp.pop %v1006
    %v1008 = vmul.f32 %v1006, %v1007
    %v1009 = vsub.f32 1.0, %v1008
    %v1010 = vmul.f32 %v1007, %v1009
    %v1011 = vadd.f32 %v1007, %v1010
    %vm1012 = vweird.f32 %v1006
    %vm1013 = vweird.f32 %v1007
    %vm1014 = vmor %vm1012, %vm1013
    %v1015 = vsel %vm1014, %v1007, %v1011
    %v1016 = vand.u32 2147483647, %v1006
    %vm1017 = vcmp.eq.f32.partialorder %v1016, 8.507059e+37
    %v1018 = vand.u32 %v1006, 2147483648
    %v1019 = vor.u32 1.1754944e-38, %v1018
    %v1020 = vsel %vm1017, %v1019, %v1015
    %v1021 = vmul.f32 1.0, %v1020
    %v1022 = vmul.f32 %v1001, %v901
    %v1023 = vmul.f32 %v982, %v1002
    %v1024 = vadd.f32 %v1022, %v1023
    %v1025 = vtanh.pop %v1024
    %v1026 = vmul.f32 %v1021, %v1025
    %1027 = vst [vmem:[#allocation3] sm:$0xff] %v1024
    %1028 = vst [vmem:[#allocation2] sm:$0xff] %v1026
    %v1029 = vpack.c.bf16 %v1026, %v1026
    %s1030 = scalar_lea.vmem [#allocation9], 20
    %1031 = vst [vmem:[%s1030] sm:$0xf] %v1029
    %v1032 = vld [vmem:[#allocation2] sm:$0xff]
    %v1033 = vld [vmem:[#allocation3] sm:$0xff]
    %s1034 = scalar_lea.vmem [#allocation4], 192
    %v1035 = vld [vmem:[%s1034] sm:$0xff]
    %v1036 = vld [vmem:[%s1034 + $0x8] sm:$0xff]
    %v1037 = vld [vmem:[%s1034 + $0x10] sm:$0xff]
    %v1038 = vld [vmem:[%s1034 + $0x18] sm:$0xff]
    %v1039 = vpack.c.bf16 %v1032, %v1032
    %1040 = vmatpush.bf16.msra.mxu0 %v213
    %1041 = vmatpush.bf16.msra.mxu0 %v209
    %1042 = vmatpush.bf16.msra.mxu0 %v205
    %1043 = vmatpush.bf16.msra.mxu0 %v201
    %1044 = vmatpush.bf16.msra.mxu0 %v197
    %1045 = vmatpush.bf16.msra.mxu0 %v193
    %1046 = vmatpush.bf16.msra.mxu0 %v189
    %1047 = vmatpush.bf16.msra.mxu0 %v185
    %1048 = vmatmul.bf16.gmra.mxu0 %v1039
    %v1049 = vpop.f32.mrf.mxu0
    %v1050 = vadd.f32 0.0, %v1049
    %v1051 = vpop.f32.mrf.mxu0
    %1052 = vdwg.mxu0
    %1053 = vmatpush.bf16.msra.mxu0 %v214
    %1054 = vmatpush.bf16.msra.mxu0 %v210
    %1055 = vmatpush.bf16.msra.mxu0 %v206
    %1056 = vmatpush.bf16.msra.mxu0 %v202
    %1057 = vmatpush.bf16.msra.mxu0 %v198
    %1058 = vmatpush.bf16.msra.mxu0 %v194
    %1059 = vmatpush.bf16.msra.mxu0 %v190
    %1060 = vmatpush.bf16.msra.mxu0 %v186
    %1061 = vmatmul.bf16.gmra.mxu0 %v1039
    %v1062 = vpop.f32.mrf.mxu0
    %v1063 = vadd.f32 0.0, %v1062
    %v1064 = vpop.f32.mrf.mxu0
    %1065 = vdwg.mxu0
    %1066 = vmatpush.bf16.msra.mxu0 %v215
    %1067 = vmatpush.bf16.msra.mxu0 %v211
    %1068 = vmatpush.bf16.msra.mxu0 %v207
    %1069 = vmatpush.bf16.msra.mxu0 %v203
    %1070 = vmatpush.bf16.msra.mxu0 %v199
    %1071 = vmatpush.bf16.msra.mxu0 %v195
    %1072 = vmatpush.bf16.msra.mxu0 %v191
    %1073 = vmatpush.bf16.msra.mxu0 %v187
    %1074 = vmatmul.bf16.gmra.mxu0 %v1039
    %v1075 = vpop.f32.mrf.mxu0
    %v1076 = vadd.f32 0.0, %v1075
    %v1077 = vpop.f32.mrf.mxu0
    %1078 = vdwg.mxu0
    %1079 = vmatpush.bf16.msra.mxu0 %v216
    %1080 = vmatpush.bf16.msra.mxu0 %v212
    %1081 = vmatpush.bf16.msra.mxu0 %v208
    %1082 = vmatpush.bf16.msra.mxu0 %v204
    %1083 = vmatpush.bf16.msra.mxu0 %v200
    %1084 = vmatpush.bf16.msra.mxu0 %v196
    %1085 = vmatpush.bf16.msra.mxu0 %v192
    %1086 = vmatpush.bf16.msra.mxu0 %v188
    %1087 = vmatmul.bf16.gmra.mxu0 %v1039
    %v1088 = vpop.f32.mrf.mxu0
    %v1089 = vadd.f32 0.0, %v1088
    %v1090 = vpop.f32.mrf.mxu0
    %1091 = vdwg.mxu0
    %v1092 = vadd.f32 %v1035, %v1050
    %v1093 = vadd.f32 %v1036, %v1063
    %v1094 = vadd.f32 %v1037, %v1076
    %v1095 = vadd.f32 %v1038, %v1089
    %v1096 = vxor.u32 %v1092, 2147483648
    %v1097 = vmul.f32 %v1096, 1.442695
    %v1098 = vpow.pop %v1097
    %v1099 = vadd.f32 %v1098, 1.0
    %v1100 = vrcp.pop %v1099
    %v1101 = vmul.f32 %v1099, %v1100
    %v1102 = vsub.f32 1.0, %v1101
    %v1103 = vmul.f32 %v1100, %v1102
    %v1104 = vadd.f32 %v1100, %v1103
    %vm1105 = vweird.f32 %v1099
    %vm1106 = vweird.f32 %v1100
    %vm1107 = vmor %vm1105, %vm1106
    %v1108 = vsel %vm1107, %v1100, %v1104
    %v1109 = vand.u32 2147483647, %v1099
    %vm1110 = vcmp.eq.f32.partialorder %v1109, 8.507059e+37
    %v1111 = vand.u32 %v1099, 2147483648
    %v1112 = vor.u32 1.1754944e-38, %v1111
    %v1113 = vsel %vm1110, %v1112, %v1108
    %v1114 = vmul.f32 1.0, %v1113
    %v1115 = vxor.u32 %v1093, 2147483648
    %v1116 = vmul.f32 %v1115, 1.442695
    %v1117 = vpow.pop %v1116
    %v1118 = vadd.f32 %v1117, 1.0
    %v1119 = vrcp.pop %v1118
    %v1120 = vmul.f32 %v1118, %v1119
    %v1121 = vsub.f32 1.0, %v1120
    %v1122 = vmul.f32 %v1119, %v1121
    %v1123 = vadd.f32 %v1119, %v1122
    %vm1124 = vweird.f32 %v1118
    %vm1125 = vweird.f32 %v1119
    %vm1126 = vmor %vm1124, %vm1125
    %v1127 = vsel %vm1126, %v1119, %v1123
    %v1128 = vand.u32 2147483647, %v1118
    %vm1129 = vcmp.eq.f32.partialorder %v1128, 8.507059e+37
    %v1130 = vand.u32 %v1118, 2147483648
    %v1131 = vor.u32 1.1754944e-38, %v1130
    %v1132 = vsel %vm1129, %v1131, %v1127
    %v1133 = vmul.f32 1.0, %v1132
    %v1134 = vtanh.pop %v1094
    %v1135 = vxor.u32 %v1095, 2147483648
    %v1136 = vmul.f32 %v1135, 1.442695
    %v1137 = vpow.pop %v1136
    %v1138 = vadd.f32 %v1137, 1.0
    %v1139 = vrcp.pop %v1138
    %v1140 = vmul.f32 %v1138, %v1139
    %v1141 = vsub.f32 1.0, %v1140
    %v1142 = vmul.f32 %v1139, %v1141
    %v1143 = vadd.f32 %v1139, %v1142
    %vm1144 = vweird.f32 %v1138
    %vm1145 = vweird.f32 %v1139
    %vm1146 = vmor %vm1144, %vm1145
    %v1147 = vsel %vm1146, %v1139, %v1143
    %v1148 = vand.u32 2147483647, %v1138
    %vm1149 = vcmp.eq.f32.partialorder %v1148, 8.507059e+37
    %v1150 = vand.u32 %v1138, 2147483648
    %v1151 = vor.u32 1.1754944e-38, %v1150
    %v1152 = vsel %vm1149, %v1151, %v1147
    %v1153 = vmul.f32 1.0, %v1152
    %v1154 = vmul.f32 %v1133, %v1033
    %v1155 = vmul.f32 %v1114, %v1134
    %v1156 = vadd.f32 %v1154, %v1155
    %v1157 = vtanh.pop %v1156
    %v1158 = vmul.f32 %v1153, %v1157
    %1159 = vst [vmem:[#allocation3] sm:$0xff] %v1156
    %1160 = vst [vmem:[#allocation2] sm:$0xff] %v1158
    %v1161 = vpack.c.bf16 %v1158, %v1158
    %s1162 = scalar_lea.vmem [#allocation9], 24
    %1163 = vst [vmem:[%s1162] sm:$0xf] %v1161
    %v1164 = vld [vmem:[#allocation2] sm:$0xff]
    %v1165 = vld [vmem:[#allocation3] sm:$0xff]
    %s1166 = scalar_lea.vmem [#allocation4], 224
    %v1167 = vld [vmem:[%s1166] sm:$0xff]
    %v1168 = vld [vmem:[%s1166 + $0x8] sm:$0xff]
    %v1169 = vld [vmem:[%s1166 + $0x10] sm:$0xff]
    %v1170 = vld [vmem:[%s1166 + $0x18] sm:$0xff]
    %v1171 = vpack.c.bf16 %v1164, %v1164
    %1172 = vmatpush.bf16.msra.mxu0 %v213
    %1173 = vmatpush.bf16.msra.mxu0 %v209
    %1174 = vmatpush.bf16.msra.mxu0 %v205
    %1175 = vmatpush.bf16.msra.mxu0 %v201
    %1176 = vmatpush.bf16.msra.mxu0 %v197
    %1177 = vmatpush.bf16.msra.mxu0 %v193
    %1178 = vmatpush.bf16.msra.mxu0 %v189
    %1179 = vmatpush.bf16.msra.mxu0 %v185
    %1180 = vmatmul.bf16.gmra.mxu0 %v1171
    %v1181 = vpop.f32.mrf.mxu0
    %v1182 = vadd.f32 0.0, %v1181
    %v1183 = vpop.f32.mrf.mxu0
    %1184 = vdwg.mxu0
    %1185 = vmatpush.bf16.msra.mxu0 %v214
    %1186 = vmatpush.bf16.msra.mxu0 %v210
    %1187 = vmatpush.bf16.msra.mxu0 %v206
    %1188 = vmatpush.bf16.msra.mxu0 %v202
    %1189 = vmatpush.bf16.msra.mxu0 %v198
    %1190 = vmatpush.bf16.msra.mxu0 %v194
    %1191 = vmatpush.bf16.msra.mxu0 %v190
    %1192 = vmatpush.bf16.msra.mxu0 %v186
    %1193 = vmatmul.bf16.gmra.mxu0 %v1171
    %v1194 = vpop.f32.mrf.mxu0
    %v1195 = vadd.f32 0.0, %v1194
    %v1196 = vpop.f32.mrf.mxu0
    %1197 = vdwg.mxu0
    %1198 = vmatpush.bf16.msra.mxu0 %v215
    %1199 = vmatpush.bf16.msra.mxu0 %v211
    %1200 = vmatpush.bf16.msra.mxu0 %v207
    %1201 = vmatpush.bf16.msra.mxu0 %v203
    %1202 = vmatpush.bf16.msra.mxu0 %v199
    %1203 = vmatpush.bf16.msra.mxu0 %v195
    %1204 = vmatpush.bf16.msra.mxu0 %v191
    %1205 = vmatpush.bf16.msra.mxu0 %v187
    %1206 = vmatmul.bf16.gmra.mxu0 %v1171
    %v1207 = vpop.f32.mrf.mxu0
    %v1208 = vadd.f32 0.0, %v1207
    %v1209 = vpop.f32.mrf.mxu0
    %1210 = vdwg.mxu0
    %1211 = vmatpush.bf16.msra.mxu0 %v216
    %1212 = vmatpush.bf16.msra.mxu0 %v212
    %1213 = vmatpush.bf16.msra.mxu0 %v208
    %1214 = vmatpush.bf16.msra.mxu0 %v204
    %1215 = vmatpush.bf16.msra.mxu0 %v200
    %1216 = vmatpush.bf16.msra.mxu0 %v196
    %1217 = vmatpush.bf16.msra.mxu0 %v192
    %1218 = vmatpush.bf16.msra.mxu0 %v188
    %1219 = vmatmul.bf16.gmra.mxu0 %v1171
    %v1220 = vpop.f32.mrf.mxu0
    %v1221 = vadd.f32 0.0, %v1220
    %v1222 = vpop.f32.mrf.mxu0
    %1223 = vdwg.mxu0
    %v1224 = vadd.f32 %v1167, %v1182
    %v1225 = vadd.f32 %v1168, %v1195
    %v1226 = vadd.f32 %v1169, %v1208
    %v1227 = vadd.f32 %v1170, %v1221
    %v1228 = vxor.u32 %v1224, 2147483648
    %v1229 = vmul.f32 %v1228, 1.442695
    %v1230 = vpow.pop %v1229
    %v1231 = vadd.f32 %v1230, 1.0
    %v1232 = vrcp.pop %v1231
    %v1233 = vmul.f32 %v1231, %v1232
    %v1234 = vsub.f32 1.0, %v1233
    %v1235 = vmul.f32 %v1232, %v1234
    %v1236 = vadd.f32 %v1232, %v1235
    %vm1237 = vweird.f32 %v1231
    %vm1238 = vweird.f32 %v1232
    %vm1239 = vmor %vm1237, %vm1238
    %v1240 = vsel %vm1239, %v1232, %v1236
    %v1241 = vand.u32 2147483647, %v1231
    %vm1242 = vcmp.eq.f32.partialorder %v1241, 8.507059e+37
    %v1243 = vand.u32 %v1231, 2147483648
    %v1244 = vor.u32 1.1754944e-38, %v1243
    %v1245 = vsel %vm1242, %v1244, %v1240
    %v1246 = vmul.f32 1.0, %v1245
    %v1247 = vxor.u32 %v1225, 2147483648
    %v1248 = vmul.f32 %v1247, 1.442695
    %v1249 = vpow.pop %v1248
    %v1250 = vadd.f32 %v1249, 1.0
    %v1251 = vrcp.pop %v1250
    %v1252 = vmul.f32 %v1250, %v1251
    %v1253 = vsub.f32 1.0, %v1252
    %v1254 = vmul.f32 %v1251, %v1253
    %v1255 = vadd.f32 %v1251, %v1254
    %vm1256 = vweird.f32 %v1250
    %vm1257 = vweird.f32 %v1251
    %vm1258 = vmor %vm1256, %vm1257
    %v1259 = vsel %vm1258, %v1251, %v1255
    %v1260 = vand.u32 2147483647, %v1250
    %vm1261 = vcmp.eq.f32.partialorder %v1260, 8.507059e+37
    %v1262 = vand.u32 %v1250, 2147483648
    %v1263 = vor.u32 1.1754944e-38, %v1262
    %v1264 = vsel %vm1261, %v1263, %v1259
    %v1265 = vmul.f32 1.0, %v1264
    %v1266 = vtanh.pop %v1226
    %v1267 = vxor.u32 %v1227, 2147483648
    %v1268 = vmul.f32 %v1267, 1.442695
    %v1269 = vpow.pop %v1268
    %v1270 = vadd.f32 %v1269, 1.0
    %v1271 = vrcp.pop %v1270
    %v1272 = vmul.f32 %v1270, %v1271
    %v1273 = vsub.f32 1.0, %v1272
    %v1274 = vmul.f32 %v1271, %v1273
    %v1275 = vadd.f32 %v1271, %v1274
    %vm1276 = vweird.f32 %v1270
    %vm1277 = vweird.f32 %v1271
    %vm1278 = vmor %vm1276, %vm1277
    %v1279 = vsel %vm1278, %v1271, %v1275
    %v1280 = vand.u32 2147483647, %v1270
    %vm1281 = vcmp.eq.f32.partialorder %v1280, 8.507059e+37
    %v1282 = vand.u32 %v1270, 2147483648
    %v1283 = vor.u32 1.1754944e-38, %v1282
    %v1284 = vsel %vm1281, %v1283, %v1279
    %v1285 = vmul.f32 1.0, %v1284
    %v1286 = vmul.f32 %v1265, %v1165
    %v1287 = vmul.f32 %v1246, %v1266
    %v1288 = vadd.f32 %v1286, %v1287
    %v1289 = vtanh.pop %v1288
    %v1290 = vmul.f32 %v1285, %v1289
    %1291 = vst [vmem:[#allocation3] sm:$0xff] %v1288
    %1292 = vst [vmem:[#allocation2] sm:$0xff] %v1290
    %v1293 = vpack.c.bf16 %v1290, %v1290
    %s1294 = scalar_lea.vmem [#allocation9], 28
    %1295 = vst [vmem:[%s1294] sm:$0xf] %v1293
    // Predicated region
    $region22: #{tpu_custom_call.1} parent=1 // pred_check
      _
    $region23: #{tpu_custom_call.1} parent=1 // pred_check_branch
      %1297 = sbr.rel (0) target = $region25
    $region24: #{tpu_custom_call.1} parent=1 // pred_region
      %1299 = vsyncadd [#allocation6], 0
      %s1300 = sshll.u32 [#allocation9], 4
      %s1301 = int_to_ptr.vmem [resolvable:$true] %s1300
      %s1302 = sshll.u32 %s2, 4
      %s1303 = int_to_ptr.hbm [resolvable:$true] %s1302
      %1308 = dma.vmem_to_hbm [thread:$0]  %s1301, 512, %s1303, [#allocation6], 64, 64, 4
    $region25: #{tpu_custom_call.1} parent=1 // pred_fallthru
      _
    // Predicated region
    $region26: #{tpu_custom_call.1} parent=1 // pred_check
      _
    $region27: #{tpu_custom_call.1} parent=1 // pred_check_branch
      %1310 = sbr.rel (0) target = $region29
    $region28: #{tpu_custom_call.1} parent=1 // pred_region
      %1312 = dma.done [#allocation6], 512
    $region29: #{tpu_custom_call.1} parent=1 // pred_fallthru
      _
    %1313 = vsyncpa [#allocation5], 1
    %1314 = vsyncpa [#allocation8], 1
    %1315 = vsyncpa [#allocation6], 1

</llo_original>
